<compile_context>
chip_gen: v5e
topology: v5e:2x2
jax: 0.10.0
libtpu: 0.0.40
codegen_flags: <defaults>
</compile_context>

<pallas_src>
import functools

import jax
import jax.numpy as jnp
from jax.experimental import pallas as pl
from jax.experimental.pallas import tpu as pltpu


def _round_up(x, m):
    return ((x + m - 1) // m) * m


def vae_kernel(x_ref, eps_ref,
               w1_ref, b1_ref, w2_ref, b2_ref,
               wml_ref, bml_ref,
               w3_ref, b3_ref, w4_ref, b4_ref,
               w5_ref, b5_ref,
               recon_ref, mulogvar_ref, *, lat_pad):
    f32 = jnp.float32

    def linear(a, w_ref, b_ref):
        # MXU matmul in the weight dtype (bf16) with f32 accumulation; the
        # bias add and everything elementwise stays in f32.
        acc = jnp.dot(a.astype(w_ref.dtype), w_ref[...],
                      preferred_element_type=jnp.float32)
        return acc + b_ref[...].astype(f32)

    x = x_ref[...]                                   # bf16, lane-padded

    # ---- encoder: Linear(in,256)+ReLU -> Linear(256,128)+ReLU ----
    h = jnp.maximum(linear(x, w1_ref, b1_ref), 0.0)
    h = jnp.maximum(linear(h, w2_ref, b2_ref), 0.0)

    # ---- fused mu|logvar head: one (128, 2*lat_pad) GEMM,
    #      split at lane lat_pad (=128) -> free, lane-aligned views ----
    ml = linear(h, wml_ref, bml_ref)                 # (tb, 2*lat_pad), f32
    mu = ml[:, :lat_pad]
    logvar = ml[:, lat_pad:]

    # ---- reparameterize: z = mu + eps * exp(0.5*logvar) ----
    # Padded lanes: logvar=0 -> std=1, mu=0, eps=0 -> z=0 there.
    std = jnp.exp(0.5 * logvar)
    z = mu + eps_ref[...].astype(f32) * std          # (tb, lat_pad)

    # ---- decoder: Linear(lat,128)+ReLU -> Linear(128,256)+ReLU
    #               -> Linear(256,in)+Sigmoid ----
    d = jnp.maximum(linear(z, w3_ref, b3_ref), 0.0)  # K=128 clean MXU pass
    d = jnp.maximum(linear(d, w4_ref, b4_ref), 0.0)
    y = linear(d, w5_ref, b5_ref)

    # sigmoid(y) = 1 / (1 + exp(-y)); approx reciprocal runs on the EUP slot.
    # Clamp to [0,1] so the approx reciprocal cannot leave sigmoid's range.
    recon = jnp.clip(pl.reciprocal(1.0 + jnp.exp(-y), approx=True), 0.0, 1.0)

    recon_ref[...] = recon.astype(recon_ref.dtype)
    mulogvar_ref[...] = ml.astype(mulogvar_ref.dtype)


def init_vae_params(key, input_dim=601, latent_dim=10,
                    weight_dtype=jnp.bfloat16, bias_dtype=jnp.float32):
    """PyTorch-style init U(-1/sqrt(fan_in), 1/sqrt(fan_in)); weights in bf16.

    NOTE: bf16 weights (with f32 accumulation) will not bit-match a float32
    PyTorch VAE; expect ~1e-2 relative differences.
    """
    dims = [
        (input_dim, 256),   # encoder[0]
        (256, 128),         # encoder[2]
        (128, latent_dim),  # fc_mu
        (128, latent_dim),  # fc_logvar
        (latent_dim, 128),  # decoder[0]
        (128, 256),         # decoder[2]
        (256, input_dim),   # decoder[4]
    ]
    params = []
    for fan_in, fan_out in dims:
        key, kw, kb = jax.random.split(key, 3)
        bound = fan_in ** -0.5
        w = jax.random.uniform(kw, (fan_in, fan_out), jnp.float32, -bound, bound)
        b = jax.random.uniform(kb, (1, fan_out), jnp.float32, -bound, bound)
        params.append((w.astype(weight_dtype), b.astype(bias_dtype)))
    return params


def prepare_vae_params(params, input_dim=601, latent_dim=10):
    """One-time packing of weights into the kernel layout (outside the jitted
    hot path, so the pads/concats don't re-run every forward call)."""
    (w1, b1), (w2, b2), (wmu, bmu), (wlv, blv), (w3, b3), (w4, b4), (w5, b5) = params
    in_pad = _round_up(input_dim, 128)      # 601 -> 640 lane-dense IO
    lat_pad = _round_up(latent_dim, 128)    # 10  -> 128 lane-aligned latent

    w1p = jnp.pad(w1, ((0, in_pad - input_dim), (0, 0)))
    w5p = jnp.pad(w5, ((0, 0), (0, in_pad - input_dim)))
    b5p = jnp.pad(b5, ((0, 0), (0, in_pad - input_dim)))

    # Fused mu|logvar head: mu in lanes [0, lat_pad), logvar in [lat_pad, 2*lat_pad).
    wml = jnp.zeros((128, 2 * lat_pad), wmu.dtype)
    wml = wml.at[:, :latent_dim].set(wmu)
    wml = wml.at[:, lat_pad:lat_pad + latent_dim].set(wlv)
    bml = jnp.zeros((1, 2 * lat_pad), bmu.dtype)
    bml = bml.at[:, :latent_dim].set(bmu)
    bml = bml.at[:, lat_pad:lat_pad + latent_dim].set(blv)

    # decoder[0]: row-pad to lat_pad so z is a clean K=128 MXU operand.
    w3p = jnp.pad(w3, ((0, lat_pad - latent_dim), (0, 0)))

    return [w1p, b1, w2, b2, wml, bml, w3p, b3, w4, b4, w5p, b5p]


def _pick_batch_tile(B):
    """Batch tile: big (256-512) when B is large, capped so the grid has >= 2
    steps (v7x megacore); sublane-aligned single tile for small B."""
    if B >= 256:
        tb = min(512, (_round_up(B, 128) // 2))
        tb = max(128, (tb // 128) * 128)
    elif B >= 128:
        tb = 128
    else:
        tb = _round_up(max(B, 1), 8)
    return tb


@functools.partial(jax.jit, static_argnames=("input_dim", "latent_dim"))
def vae_forward(x, eps, prepared_weights, *, input_dim=601, latent_dim=10):
    B = x.shape[0]
    in_pad = _round_up(input_dim, 128)
    lat_pad = _round_up(latent_dim, 128)

    tb = _pick_batch_tile(B)
    b_pad = _round_up(B, tb)

    # bf16 input stream (largest DMA) fused into the zero-pad; eps lane-padded
    # to 128 so the latent path is lane-dense end to end.
    xp = jnp.pad(x.astype(jnp.bfloat16),
                 ((0, b_pad - B), (0, in_pad - input_dim)))
    epsp = jnp.pad(eps.astype(jnp.float32),
                   ((0, b_pad - B), (0, lat_pad - latent_dim)))

    weights = prepared_weights

    grid = (b_pad // tb,)

    def batch_map(i):
        return (i, 0)

    def resident_map(i):
        return (0, 0)   # constant block index -> weights stay VMEM-resident

    in_specs = [
        pl.BlockSpec((tb, in_pad), batch_map),           # x tile (bf16)
        pl.BlockSpec((tb, lat_pad), batch_map),          # eps tile
    ] + [pl.BlockSpec(w.shape, resident_map) for w in weights]

    out_specs = (
        pl.BlockSpec((tb, in_pad), batch_map),           # recon (bf16, padded)
        pl.BlockSpec((tb, 2 * lat_pad), batch_map),      # packed mu|logvar
    )

    out_shape = (
        jax.ShapeDtypeStruct((b_pad, in_pad), jnp.bfloat16),
        jax.ShapeDtypeStruct((b_pad, 2 * lat_pad), jnp.float32),
    )

    # Advisory cost estimate so XLA schedules around this small custom call.
    layer_dims = [(in_pad, 256), (256, 128), (128, 2 * lat_pad),
                  (lat_pad, 128), (128, 256), (256, in_pad)]
    flops = 2 * b_pad * sum(a * b for a, b in layer_dims)
    transcendentals = b_pad * (lat_pad + 2 * in_pad)     # exp(std), exp+rcp(sigmoid)
    bytes_accessed = int(
        sum(w.size * w.dtype.itemsize for w in weights)
        + xp.size * xp.dtype.itemsize
        + epsp.size * epsp.dtype.itemsize
        + b_pad * in_pad * 2                     # recon bf16
        + b_pad * 2 * lat_pad * 4                # packed mu|logvar f32
    )

    recon_p, ml_p = pl.pallas_call(
        functools.partial(vae_kernel, lat_pad=lat_pad),
        out_shape=out_shape,
        grid=grid,
        in_specs=in_specs,
        out_specs=out_specs,
        compiler_params=pltpu.CompilerParams(
            dimension_semantics=("parallel",),   # v7x: batch tiles across 2 TCs
            vmem_limit_bytes=32 << 20,
        ),
        cost_estimate=pl.CostEstimate(
            flops=flops,
            transcendentals=transcendentals,
            bytes_accessed=bytes_accessed,
        ),
    )(xp, epsp, *weights)

    recon = recon_p[:B, :input_dim].astype(jnp.float32)
    mu = ml_p[:B, :latent_dim]
    logvar = ml_p[:B, lat_pad:lat_pad + latent_dim]
    return recon, mu, logvar


if __name__ == "__main__":
    input_dim = 601
    latent_dim = 10
    batch = 8

    key = jax.random.PRNGKey(0)
    k_params, k_x, k_eps = jax.random.split(key, 3)

    params = init_vae_params(k_params, input_dim=input_dim, latent_dim=latent_dim)
    prepared = prepare_vae_params(params, input_dim=input_dim, latent_dim=latent_dim)

    x = jax.random.uniform(k_x, (batch, input_dim), jnp.float32)
    # eps ~ N(0,1): passed in explicitly so the kernel matches torch.randn_like
    # semantics deterministically.
    eps = jax.random.normal(k_eps, (batch, latent_dim), jnp.float32)

    recon, mu, logvar = vae_forward(
        x, eps, prepared, input_dim=input_dim, latent_dim=latent_dim
    )
    jax.block_until_ready((recon, mu, logvar))

    assert recon.shape == (batch, input_dim)
    assert mu.shape == (batch, latent_dim)
    assert logvar.shape == (batch, latent_dim)
    assert bool(jnp.all(jnp.isfinite(recon)))
    assert bool(jnp.all((recon >= 0.0) & (recon <= 1.0)))  # sigmoid output range
    assert bool(jnp.all(jnp.isfinite(mu)))
    assert bool(jnp.all(jnp.isfinite(logvar)))

    print("KERNEL_OK")
</pallas_src>

<mosaic_0001>
module attributes {stable_mosaic.version = 11 : i64} {
  func.func @vae_kernel(%arg0: i32, %arg1: memref<8x640xbf16, #tpu.memory_space<vmem>>, %arg2: memref<8x128xf32, #tpu.memory_space<vmem>>, %arg3: memref<640x256xbf16, #tpu.memory_space<vmem>>, %arg4: memref<1x256xf32, #tpu.memory_space<vmem>>, %arg5: memref<256x128xbf16, #tpu.memory_space<vmem>>, %arg6: memref<1x128xf32, #tpu.memory_space<vmem>>, %arg7: memref<128x256xbf16, #tpu.memory_space<vmem>>, %arg8: memref<1x256xf32, #tpu.memory_space<vmem>>, %arg9: memref<128x128xbf16, #tpu.memory_space<vmem>>, %arg10: memref<1x128xf32, #tpu.memory_space<vmem>>, %arg11: memref<128x256xbf16, #tpu.memory_space<vmem>>, %arg12: memref<1x256xf32, #tpu.memory_space<vmem>>, %arg13: memref<256x640xbf16, #tpu.memory_space<vmem>>, %arg14: memref<1x640xf32, #tpu.memory_space<vmem>>, %arg15: memref<8x640xbf16, #tpu.memory_space<vmem>>, %arg16: memref<8x256xf32, #tpu.memory_space<vmem>>) attributes {dimension_semantics = [#tpu.dimension_semantics<parallel>], iteration_bounds = array<i64: 1>, scalar_prefetch = 0 : i64, scratch_operands = 0 : i64, tpu.core_type = #tpu.core_type<tc>, window_params = [{transform_indices = @transform_0, window_bounds = array<i64: 8, 640>}, {transform_indices = @transform_1, window_bounds = array<i64: 8, 128>}, {pipeline_mode = #tpu.pipeline_mode<synchronous>, transform_indices = @transform_2, window_bounds = array<i64: 640, 256>}, {pipeline_mode = #tpu.pipeline_mode<synchronous>, transform_indices = @transform_3, window_bounds = array<i64: 1, 256>}, {pipeline_mode = #tpu.pipeline_mode<synchronous>, transform_indices = @transform_4, window_bounds = array<i64: 256, 128>}, {pipeline_mode = #tpu.pipeline_mode<synchronous>, transform_indices = @transform_5, window_bounds = array<i64: 1, 128>}, {pipeline_mode = #tpu.pipeline_mode<synchronous>, transform_indices = @transform_6, window_bounds = array<i64: 128, 256>}, {pipeline_mode = #tpu.pipeline_mode<synchronous>, transform_indices = @transform_7, window_bounds = array<i64: 1, 256>}, {pipeline_mode = #tpu.pipeline_mode<synchronous>, transform_indices = @transform_8, window_bounds = array<i64: 128, 128>}, {pipeline_mode = #tpu.pipeline_mode<synchronous>, transform_indices = @transform_9, window_bounds = array<i64: 1, 128>}, {pipeline_mode = #tpu.pipeline_mode<synchronous>, transform_indices = @transform_10, window_bounds = array<i64: 128, 256>}, {pipeline_mode = #tpu.pipeline_mode<synchronous>, transform_indices = @transform_11, window_bounds = array<i64: 1, 256>}, {pipeline_mode = #tpu.pipeline_mode<synchronous>, transform_indices = @transform_12, window_bounds = array<i64: 256, 640>}, {pipeline_mode = #tpu.pipeline_mode<synchronous>, transform_indices = @transform_13, window_bounds = array<i64: 1, 640>}, {transform_indices = @transform_14, window_bounds = array<i64: 8, 640>}, {transform_indices = @transform_15, window_bounds = array<i64: 8, 256>}]} {
    %c0 = arith.constant 0 : index
    %c0_0 = arith.constant 0 : index
    %0 = vector.load %arg1[%c0, %c0_0] : memref<8x640xbf16, #tpu.memory_space<vmem>>, vector<8x640xbf16>
    %c0_1 = arith.constant 0 : index
    %c0_2 = arith.constant 0 : index
    %1 = vector.load %arg3[%c0_1, %c0_2] : memref<640x256xbf16, #tpu.memory_space<vmem>>, vector<640x256xbf16>
    %cst = arith.constant dense<0.000000e+00> : vector<8x256xf32>
    %2 = tpu.matmul %0, %1, %cst {dimension_numbers = #tpu.dot_dimension_numbers<[1], [0], [0], [1], [0, 0, 1, 1], [], []>} : vector<8x640xbf16>, vector<640x256xbf16>, vector<8x256xf32> -> vector<8x256xf32>
    %c0_3 = arith.constant 0 : index
    %c0_4 = arith.constant 0 : index
    %3 = vector.load %arg4[%c0_3, %c0_4] : memref<1x256xf32, #tpu.memory_space<vmem>>, vector<1x256xf32>
    %4 = vector.broadcast %3 : vector<1x256xf32> to vector<8x256xf32>
    %5 = arith.addf %2, %4 : vector<8x256xf32>
    %cst_5 = arith.constant 0.000000e+00 : f32
    %6 = vector.broadcast %cst_5 : f32 to vector<8x256xf32>
    %7 = arith.maximumf %5, %6 : vector<8x256xf32>
    %8 = arith.truncf %7 : vector<8x256xf32> to vector<8x256xbf16>
    %c0_6 = arith.constant 0 : index
    %c0_7 = arith.constant 0 : index
    %9 = vector.load %arg5[%c0_6, %c0_7] : memref<256x128xbf16, #tpu.memory_space<vmem>>, vector<256x128xbf16>
    %cst_8 = arith.constant dense<0.000000e+00> : vector<8x128xf32>
    %10 = tpu.matmul %8, %9, %cst_8 {dimension_numbers = #tpu.dot_dimension_numbers<[1], [0], [0], [1], [0, 0, 1, 1], [], []>} : vector<8x256xbf16>, vector<256x128xbf16>, vector<8x128xf32> -> vector<8x128xf32>
    %c0_9 = arith.constant 0 : index
    %c0_10 = arith.constant 0 : index
    %11 = vector.load %arg6[%c0_9, %c0_10] : memref<1x128xf32, #tpu.memory_space<vmem>>, vector<1x128xf32>
    %12 = vector.broadcast %11 : vector<1x128xf32> to vector<8x128xf32>
    %13 = arith.addf %10, %12 : vector<8x128xf32>
    %cst_11 = arith.constant 0.000000e+00 : f32
    %14 = vector.broadcast %cst_11 : f32 to vector<8x128xf32>
    %15 = arith.maximumf %13, %14 : vector<8x128xf32>
    %16 = arith.truncf %15 : vector<8x128xf32> to vector<8x128xbf16>
    %c0_12 = arith.constant 0 : index
    %c0_13 = arith.constant 0 : index
    %17 = vector.load %arg7[%c0_12, %c0_13] : memref<128x256xbf16, #tpu.memory_space<vmem>>, vector<128x256xbf16>
    %cst_14 = arith.constant dense<0.000000e+00> : vector<8x256xf32>
    %18 = tpu.matmul %16, %17, %cst_14 {dimension_numbers = #tpu.dot_dimension_numbers<[1], [0], [0], [1], [0, 0, 1, 1], [], []>} : vector<8x128xbf16>, vector<128x256xbf16>, vector<8x256xf32> -> vector<8x256xf32>
    %c0_15 = arith.constant 0 : index
    %c0_16 = arith.constant 0 : index
    %19 = vector.load %arg8[%c0_15, %c0_16] : memref<1x256xf32, #tpu.memory_space<vmem>>, vector<1x256xf32>
    %20 = vector.broadcast %19 : vector<1x256xf32> to vector<8x256xf32>
    %21 = arith.addf %18, %20 : vector<8x256xf32>
    %22 = vector.extract_strided_slice %21 {offsets = [0, 0], sizes = [8, 128], strides = [1, 1]} : vector<8x256xf32> to vector<8x128xf32>
    %23 = vector.extract_strided_slice %21 {offsets = [0, 128], sizes = [8, 128], strides = [1, 1]} : vector<8x256xf32> to vector<8x128xf32>
    %cst_17 = arith.constant 5.000000e-01 : f32
    %24 = vector.broadcast %cst_17 : f32 to vector<8x128xf32>
    %25 = arith.mulf %24, %23 : vector<8x128xf32>
    %26 = math.exp %25 : vector<8x128xf32>
    %c0_18 = arith.constant 0 : index
    %c0_19 = arith.constant 0 : index
    %27 = vector.load %arg2[%c0_18, %c0_19] : memref<8x128xf32, #tpu.memory_space<vmem>>, vector<8x128xf32>
    %28 = arith.mulf %27, %26 : vector<8x128xf32>
    %29 = arith.addf %22, %28 : vector<8x128xf32>
    %30 = arith.truncf %29 : vector<8x128xf32> to vector<8x128xbf16>
    %c0_20 = arith.constant 0 : index
    %c0_21 = arith.constant 0 : index
    %31 = vector.load %arg9[%c0_20, %c0_21] : memref<128x128xbf16, #tpu.memory_space<vmem>>, vector<128x128xbf16>
    %cst_22 = arith.constant dense<0.000000e+00> : vector<8x128xf32>
    %32 = tpu.matmul %30, %31, %cst_22 {dimension_numbers = #tpu.dot_dimension_numbers<[1], [0], [0], [1], [0, 0, 1, 1], [], []>} : vector<8x128xbf16>, vector<128x128xbf16>, vector<8x128xf32> -> vector<8x128xf32>
    %c0_23 = arith.constant 0 : index
    %c0_24 = arith.constant 0 : index
    %33 = vector.load %arg10[%c0_23, %c0_24] : memref<1x128xf32, #tpu.memory_space<vmem>>, vector<1x128xf32>
    %34 = vector.broadcast %33 : vector<1x128xf32> to vector<8x128xf32>
    %35 = arith.addf %32, %34 : vector<8x128xf32>
    %cst_25 = arith.constant 0.000000e+00 : f32
    %36 = vector.broadcast %cst_25 : f32 to vector<8x128xf32>
    %37 = arith.maximumf %35, %36 : vector<8x128xf32>
    %38 = arith.truncf %37 : vector<8x128xf32> to vector<8x128xbf16>
    %c0_26 = arith.constant 0 : index
    %c0_27 = arith.constant 0 : index
    %39 = vector.load %arg11[%c0_26, %c0_27] : memref<128x256xbf16, #tpu.memory_space<vmem>>, vector<128x256xbf16>
    %cst_28 = arith.constant dense<0.000000e+00> : vector<8x256xf32>
    %40 = tpu.matmul %38, %39, %cst_28 {dimension_numbers = #tpu.dot_dimension_numbers<[1], [0], [0], [1], [0, 0, 1, 1], [], []>} : vector<8x128xbf16>, vector<128x256xbf16>, vector<8x256xf32> -> vector<8x256xf32>
    %c0_29 = arith.constant 0 : index
    %c0_30 = arith.constant 0 : index
    %41 = vector.load %arg12[%c0_29, %c0_30] : memref<1x256xf32, #tpu.memory_space<vmem>>, vector<1x256xf32>
    %42 = vector.broadcast %41 : vector<1x256xf32> to vector<8x256xf32>
    %43 = arith.addf %40, %42 : vector<8x256xf32>
    %cst_31 = arith.constant 0.000000e+00 : f32
    %44 = vector.broadcast %cst_31 : f32 to vector<8x256xf32>
    %45 = arith.maximumf %43, %44 : vector<8x256xf32>
    %46 = arith.truncf %45 : vector<8x256xf32> to vector<8x256xbf16>
    %c0_32 = arith.constant 0 : index
    %c0_33 = arith.constant 0 : index
    %47 = vector.load %arg13[%c0_32, %c0_33] : memref<256x640xbf16, #tpu.memory_space<vmem>>, vector<256x640xbf16>
    %cst_34 = arith.constant dense<0.000000e+00> : vector<8x640xf32>
    %48 = tpu.matmul %46, %47, %cst_34 {dimension_numbers = #tpu.dot_dimension_numbers<[1], [0], [0], [1], [0, 0, 1, 1], [], []>} : vector<8x256xbf16>, vector<256x640xbf16>, vector<8x640xf32> -> vector<8x640xf32>
    %c0_35 = arith.constant 0 : index
    %c0_36 = arith.constant 0 : index
    %49 = vector.load %arg14[%c0_35, %c0_36] : memref<1x640xf32, #tpu.memory_space<vmem>>, vector<1x640xf32>
    %50 = vector.broadcast %49 : vector<1x640xf32> to vector<8x640xf32>
    %51 = arith.addf %48, %50 : vector<8x640xf32>
    %cst_37 = arith.constant 0.000000e+00 : f32
    %52 = vector.broadcast %cst_37 : f32 to vector<8x640xf32>
    %53 = arith.subf %52, %51 : vector<8x640xf32>
    %54 = math.exp %53 : vector<8x640xf32>
    %cst_38 = arith.constant 1.000000e+00 : f32
    %55 = vector.broadcast %cst_38 : f32 to vector<8x640xf32>
    %56 = arith.addf %55, %54 : vector<8x640xf32>
    %57 = tpu.reciprocal %56 {approx = true} : vector<8x640xf32> -> vector<8x640xf32>
    %cst_39 = arith.constant 0.000000e+00 : f32
    %cst_40 = arith.constant 1.000000e+00 : f32
    %58 = vector.broadcast %cst_39 : f32 to vector<8x640xf32>
    %59 = arith.maximumf %58, %57 : vector<8x640xf32>
    %60 = vector.broadcast %cst_40 : f32 to vector<8x640xf32>
    %61 = arith.minimumf %60, %59 : vector<8x640xf32>
    %62 = arith.truncf %61 : vector<8x640xf32> to vector<8x640xbf16>
    %c0_41 = arith.constant 0 : index
    %c0_42 = arith.constant 0 : index
    %63 = vector.load %arg15[%c0_41, %c0_42] : memref<8x640xbf16, #tpu.memory_space<vmem>>, vector<8x640xbf16>
    tpu.vector_store %arg15[%c0_41, %c0_42], %62 {strides = array<i32>} : memref<8x640xbf16, #tpu.memory_space<vmem>>, vector<8x640xbf16>,
    %c0_43 = arith.constant 0 : index
    %c0_44 = arith.constant 0 : index
    %64 = vector.load %arg16[%c0_43, %c0_44] : memref<8x256xf32, #tpu.memory_space<vmem>>, vector<8x256xf32>
    tpu.vector_store %arg16[%c0_43, %c0_44], %21 {strides = array<i32>} : memref<8x256xf32, #tpu.memory_space<vmem>>, vector<8x256xf32>,
    return
  }
  func.func @transform_0(%arg0: i32) -> (i32, i32) {
    %c0_i32 = arith.constant 0 : i32
    %c0_i32_0 = arith.constant 0 : i32
    return %arg0, %c0_i32 : i32, i32
  }
  func.func @transform_1(%arg0: i32) -> (i32, i32) {
    %c0_i32 = arith.constant 0 : i32
    %c0_i32_0 = arith.constant 0 : i32
    return %arg0, %c0_i32 : i32, i32
  }
  func.func @transform_2(%arg0: i32) -> (i32, i32) {
    %c0_i32 = arith.constant 0 : i32
    %c0_i32_0 = arith.constant 0 : i32
    %c0_i32_1 = arith.constant 0 : i32
    return %c0_i32, %c0_i32_0 : i32, i32
  }
  func.func @transform_3(%arg0: i32) -> (i32, i32) {
    %c0_i32 = arith.constant 0 : i32
    %c0_i32_0 = arith.constant 0 : i32
    %c0_i32_1 = arith.constant 0 : i32
    return %c0_i32, %c0_i32_0 : i32, i32
  }
  func.func @transform_4(%arg0: i32) -> (i32, i32) {
    %c0_i32 = arith.constant 0 : i32
    %c0_i32_0 = arith.constant 0 : i32
    %c0_i32_1 = arith.constant 0 : i32
    return %c0_i32, %c0_i32_0 : i32, i32
  }
  func.func @transform_5(%arg0: i32) -> (i32, i32) {
    %c0_i32 = arith.constant 0 : i32
    %c0_i32_0 = arith.constant 0 : i32
    %c0_i32_1 = arith.constant 0 : i32
    return %c0_i32, %c0_i32_0 : i32, i32
  }
  func.func @transform_6(%arg0: i32) -> (i32, i32) {
    %c0_i32 = arith.constant 0 : i32
    %c0_i32_0 = arith.constant 0 : i32
    %c0_i32_1 = arith.constant 0 : i32
    return %c0_i32, %c0_i32_0 : i32, i32
  }
  func.func @transform_7(%arg0: i32) -> (i32, i32) {
    %c0_i32 = arith.constant 0 : i32
    %c0_i32_0 = arith.constant 0 : i32
    %c0_i32_1 = arith.constant 0 : i32
    return %c0_i32, %c0_i32_0 : i32, i32
  }
  func.func @transform_8(%arg0: i32) -> (i32, i32) {
    %c0_i32 = arith.constant 0 : i32
    %c0_i32_0 = arith.constant 0 : i32
    %c0_i32_1 = arith.constant 0 : i32
    return %c0_i32, %c0_i32_0 : i32, i32
  }
  func.func @transform_9(%arg0: i32) -> (i32, i32) {
    %c0_i32 = arith.constant 0 : i32
    %c0_i32_0 = arith.constant 0 : i32
    %c0_i32_1 = arith.constant 0 : i32
    return %c0_i32, %c0_i32_0 : i32, i32
  }
  func.func @transform_10(%arg0: i32) -> (i32, i32) {
    %c0_i32 = arith.constant 0 : i32
    %c0_i32_0 = arith.constant 0 : i32
    %c0_i32_1 = arith.constant 0 : i32
    return %c0_i32, %c0_i32_0 : i32, i32
  }
  func.func @transform_11(%arg0: i32) -> (i32, i32) {
    %c0_i32 = arith.constant 0 : i32
    %c0_i32_0 = arith.constant 0 : i32
    %c0_i32_1 = arith.constant 0 : i32
    return %c0_i32, %c0_i32_0 : i32, i32
  }
  func.func @transform_12(%arg0: i32) -> (i32, i32) {
    %c0_i32 = arith.constant 0 : i32
    %c0_i32_0 = arith.constant 0 : i32
    %c0_i32_1 = arith.constant 0 : i32
    return %c0_i32, %c0_i32_0 : i32, i32
  }
  func.func @transform_13(%arg0: i32) -> (i32, i32) {
    %c0_i32 = arith.constant 0 : i32
    %c0_i32_0 = arith.constant 0 : i32
    %c0_i32_1 = arith.constant 0 : i32
    return %c0_i32, %c0_i32_0 : i32, i32
  }
  func.func @transform_14(%arg0: i32) -> (i32, i32) {
    %c0_i32 = arith.constant 0 : i32
    %c0_i32_0 = arith.constant 0 : i32
    return %arg0, %c0_i32 : i32, i32
  }
  func.func @transform_15(%arg0: i32) -> (i32, i32) {
    %c0_i32 = arith.constant 0 : i32
    %c0_i32_0 = arith.constant 0 : i32
    return %arg0, %c0_i32 : i32, i32
  }
}

</mosaic_0001>

<llo_original>
// kernel: vae_forward.1
$region0: #{vae_forward.1}
  #allocation0 [shape = 'u32[]', space=smem, size = 0x4, offset = 0x4, fixed_abs, tag = 'smem constant byte address 0x4 - core index']
  #allocation1 [shape = 'u32[72,128]{1,0:T(1,128)}', space=vmem, size = 0x9000, scoped, tag = 'internal scratch']
  %s0 = inlined_call_operand.vmem [shape: bf16[8,640], index: 0, kind: input, shape index: {}]
  %s1 = inlined_call_operand.vmem [shape: f32[8,128], index: 1, kind: input, shape index: {}]
  %s2 = inlined_call_operand.hbm [shape: bf16[640,256], index: 2, kind: input, shape index: {}]
  %s3 = inlined_call_operand.vmem [shape: f32[1,256], index: 3, kind: input, shape index: {}]
  %s4 = inlined_call_operand.hbm [shape: bf16[256,128], index: 4, kind: input, shape index: {}]
  %s5 = inlined_call_operand.vmem [shape: f32[1,128], index: 5, kind: input, shape index: {}]
  %s6 = inlined_call_operand.hbm [shape: bf16[128,256], index: 6, kind: input, shape index: {}]
  %s7 = inlined_call_operand.vmem [shape: f32[1,256], index: 7, kind: input, shape index: {}]
  %s8 = inlined_call_operand.vmem [shape: bf16[128,128], index: 8, kind: input, shape index: {}]
  %s9 = inlined_call_operand.vmem [shape: f32[1,128], index: 9, kind: input, shape index: {}]
  %s10 = inlined_call_operand.hbm [shape: bf16[128,256], index: 10, kind: input, shape index: {}]
  %s11 = inlined_call_operand.vmem [shape: f32[1,256], index: 11, kind: input, shape index: {}]
  %s12 = inlined_call_operand.hbm [shape: bf16[256,640], index: 12, kind: input, shape index: {}]
  %s13 = inlined_call_operand.vmem [shape: f32[1,640], index: 13, kind: input, shape index: {}]
  %s14 = inlined_call_operand.vmem [shape: bf16[8,640], index: 14, kind: output, shape index: {0}]
  %s15 = inlined_call_operand.vmem [shape: f32[8,256], index: 15, kind: output, shape index: {1}]
  %16 = xla_tuple %s14, %s15
  %s17 = sld [smem:[#allocation0]]
  $region94: #{vae_forward.1} parent=0
    _
  %s19 = ssub.s32 1, %s17
  %s20 = scalar_select 0, %s19, %s17
  $region1: #{vae_forward.1} parent=0
    #allocation2 [shape = 'u8[327680]{0}', space=vmem, size = 0x50000, scoped, tag = 'input window, operand 2, single buffered']
    #allocation3 [shape = 's32[1]{0}', space=sflag, size = 0x4, scoped, tag = 'scoped memory for vae_forward.1']
    #allocation4 [shape = 'u8[65536]{0}', space=vmem, size = 0x10000, scoped, tag = 'input window, operand 4, single buffered']
    #allocation5 [shape = 's32[1]{0}', space=sflag, size = 0x4, scoped, tag = 'scoped memory for vae_forward.1']
    #allocation6 [shape = 'u8[65536]{0}', space=vmem, size = 0x10000, scoped, tag = 'input window, operand 6, single buffered']
    #allocation7 [shape = 'u8[65536]{0}', space=vmem, size = 0x10000, scoped, tag = 'input window, operand 10, single buffered']
    #allocation8 [shape = 's32[1]{0}', space=sflag, size = 0x4, scoped, tag = 'scoped memory for vae_forward.1']
    #allocation9 [shape = 'u8[327680]{0}', space=vmem, size = 0x50000, scoped, tag = 'input window, operand 12, single buffered']
    %21 = vsyncpa [#allocation3], 0
    %22 = vsyncpa [#allocation5], 0
    %23 = vsyncpa [#allocation8], 0
    // Predicated region
    $region2: #{vae_forward.1} parent=1 // pred_check
      _
    $region3: #{vae_forward.1} parent=1 // pred_check_branch
      %25 = sbr.rel (0) target = $region5
    $region4: #{vae_forward.1} parent=1 // pred_region
      _
    $region5: #{vae_forward.1} parent=1 // pred_fallthru
      _
    // Predicated region
    $region6: #{vae_forward.1} parent=1 // pred_check
      _
    $region7: #{vae_forward.1} parent=1 // pred_check_branch
      %27 = sbr.rel (0) target = $region9
    $region8: #{vae_forward.1} parent=1 // pred_region
      _
    $region9: #{vae_forward.1} parent=1 // pred_fallthru
      _
    // Predicated region
    $region10: #{vae_forward.1} parent=1 // pred_check
      _
    $region11: #{vae_forward.1} parent=1 // pred_check_branch
      %29 = sbr.rel (0) target = $region13
    $region12: #{vae_forward.1} parent=1 // pred_region
      %31 = vsyncadd [#allocation3], 0
      %s32 = sshll.u32 %s2, 4
      %s33 = int_to_ptr.hbm [resolvable:$true] %s32
      %s34 = sshll.u32 [#allocation2], 4
      %s35 = int_to_ptr.vmem [resolvable:$true] %s34
      %40 = dma.hbm_to_vmem [thread:$0]  %s33, 10240, %s35, [#allocation3], 128, 128, 8
    $region13: #{vae_forward.1} parent=1 // pred_fallthru
      _
    // Predicated region
    $region14: #{vae_forward.1} parent=1 // pred_check
      _
    $region15: #{vae_forward.1} parent=1 // pred_check_branch
      %42 = sbr.rel (0) target = $region17
    $region16: #{vae_forward.1} parent=1 // pred_region
      _
    $region17: #{vae_forward.1} parent=1 // pred_fallthru
      _
    // Predicated region
    $region18: #{vae_forward.1} parent=1 // pred_check
      _
    $region19: #{vae_forward.1} parent=1 // pred_check_branch
      %44 = sbr.rel (0) target = $region21
    $region20: #{vae_forward.1} parent=1 // pred_region
      %46 = vsyncadd [#allocation5], 0
      %s47 = sshll.u32 %s4, 4
      %s48 = int_to_ptr.hbm [resolvable:$true] %s47
      %s49 = sshll.u32 [#allocation4], 4
      %s50 = int_to_ptr.vmem [resolvable:$true] %s49
      %55 = dma.hbm_to_vmem [thread:$0]  %s48, 2048, %s50, [#allocation5], 64, 64, 4
    $region21: #{vae_forward.1} parent=1 // pred_fallthru
      _
    // Predicated region
    $region22: #{vae_forward.1} parent=1 // pred_check
      _
    $region23: #{vae_forward.1} parent=1 // pred_check_branch
      %57 = sbr.rel (0) target = $region25
    $region24: #{vae_forward.1} parent=1 // pred_region
      _
    $region25: #{vae_forward.1} parent=1 // pred_fallthru
      _
    // Predicated region
    $region26: #{vae_forward.1} parent=1 // pred_check
      _
    $region27: #{vae_forward.1} parent=1 // pred_check_branch
      %59 = sbr.rel (0) target = $region29
    $region28: #{vae_forward.1} parent=1 // pred_region
      %61 = vsyncadd [#allocation5], 0
      %s62 = sshll.u32 %s6, 4
      %s63 = int_to_ptr.hbm [resolvable:$true] %s62
      %s64 = sshll.u32 [#allocation6], 4
      %s65 = int_to_ptr.vmem [resolvable:$true] %s64
      %70 = dma.hbm_to_vmem [thread:$0]  %s63, 2048, %s65, [#allocation5], 128, 128, 8
    $region29: #{vae_forward.1} parent=1 // pred_fallthru
      _
    // Predicated region
    $region30: #{vae_forward.1} parent=1 // pred_check
      _
    $region31: #{vae_forward.1} parent=1 // pred_check_branch
      %72 = sbr.rel (0) target = $region33
    $region32: #{vae_forward.1} parent=1 // pred_region
      _
    $region33: #{vae_forward.1} parent=1 // pred_fallthru
      _
    // Predicated region
    $region34: #{vae_forward.1} parent=1 // pred_check
      _
    $region35: #{vae_forward.1} parent=1 // pred_check_branch
      %74 = sbr.rel (0) target = $region37
    $region36: #{vae_forward.1} parent=1 // pred_region
      _
    $region37: #{vae_forward.1} parent=1 // pred_fallthru
      _
    // Predicated region
    $region38: #{vae_forward.1} parent=1 // pred_check
      _
    $region39: #{vae_forward.1} parent=1 // pred_check_branch
      %76 = sbr.rel (0) target = $region41
    $region40: #{vae_forward.1} parent=1 // pred_region
      _
    $region41: #{vae_forward.1} parent=1 // pred_fallthru
      _
    // Predicated region
    $region42: #{vae_forward.1} parent=1 // pred_check
      _
    $region43: #{vae_forward.1} parent=1 // pred_check_branch
      %78 = sbr.rel (0) target = $region45
    $region44: #{vae_forward.1} parent=1 // pred_region
      %80 = vsyncadd [#allocation8], 0
      %s81 = sshll.u32 %s10, 4
      %s82 = int_to_ptr.hbm [resolvable:$true] %s81
      %s83 = sshll.u32 [#allocation7], 4
      %s84 = int_to_ptr.vmem [resolvable:$true] %s83
      %89 = dma.hbm_to_vmem [thread:$0]  %s82, 2048, %s84, [#allocation8], 128, 128, 8
    $region45: #{vae_forward.1} parent=1 // pred_fallthru
      _
    // Predicated region
    $region46: #{vae_forward.1} parent=1 // pred_check
      _
    $region47: #{vae_forward.1} parent=1 // pred_check_branch
      %91 = sbr.rel (0) target = $region49
    $region48: #{vae_forward.1} parent=1 // pred_region
      _
    $region49: #{vae_forward.1} parent=1 // pred_fallthru
      _
    // Predicated region
    $region50: #{vae_forward.1} parent=1 // pred_check
      _
    $region51: #{vae_forward.1} parent=1 // pred_check_branch
      %93 = sbr.rel (0) target = $region53
    $region52: #{vae_forward.1} parent=1 // pred_region
      %95 = vsyncadd [#allocation8], 0
      %s96 = sshll.u32 %s12, 4
      %s97 = int_to_ptr.hbm [resolvable:$true] %s96
      %s98 = sshll.u32 [#allocation9], 4
      %s99 = int_to_ptr.vmem [resolvable:$true] %s98
      %104 = dma.hbm_to_vmem [thread:$0]  %s97, 10240, %s99, [#allocation8], 320, 320, 20
    $region53: #{vae_forward.1} parent=1 // pred_fallthru
      _
    // Predicated region
    $region54: #{vae_forward.1} parent=1 // pred_check
      _
    $region55: #{vae_forward.1} parent=1 // pred_check_branch
      %106 = sbr.rel (0) target = $region57
    $region56: #{vae_forward.1} parent=1 // pred_region
      _
    $region57: #{vae_forward.1} parent=1 // pred_fallthru
      _
    // Predicated region
    $region58: #{vae_forward.1} parent=1 // pred_check
      _
    $region59: #{vae_forward.1} parent=1 // pred_check_branch
      %108 = sbr.rel (0) target = $region61
    $region60: #{vae_forward.1} parent=1 // pred_region
      %110 = dma.done [#allocation3], 10240
    $region61: #{vae_forward.1} parent=1 // pred_fallthru
      _
    // Predicated region
    $region62: #{vae_forward.1} parent=1 // pred_check
      _
    $region63: #{vae_forward.1} parent=1 // pred_check_branch
      %112 = sbr.rel (0) target = $region65
    $region64: #{vae_forward.1} parent=1 // pred_region
      %114 = dma.done [#allocation5], 2048
    $region65: #{vae_forward.1} parent=1 // pred_fallthru
      _
    // Predicated region
    $region66: #{vae_forward.1} parent=1 // pred_check
      _
    $region67: #{vae_forward.1} parent=1 // pred_check_branch
      %116 = sbr.rel (0) target = $region69
    $region68: #{vae_forward.1} parent=1 // pred_region
      %118 = dma.done [#allocation5], 2048
    $region69: #{vae_forward.1} parent=1 // pred_fallthru
      _
    // Predicated region
    $region70: #{vae_forward.1} parent=1 // pred_check
      _
    $region71: #{vae_forward.1} parent=1 // pred_check_branch
      %120 = sbr.rel (0) target = $region73
    $region72: #{vae_forward.1} parent=1 // pred_region
      %122 = dma.done [#allocation8], 2048
    $region73: #{vae_forward.1} parent=1 // pred_fallthru
      _
    // Predicated region
    $region74: #{vae_forward.1} parent=1 // pred_check
      _
    $region75: #{vae_forward.1} parent=1 // pred_check_branch
      %124 = sbr.rel (0) target = $region77
    $region76: #{vae_forward.1} parent=1 // pred_region
      %126 = dma.done [#allocation8], 10240
    $region77: #{vae_forward.1} parent=1 // pred_fallthru
      _
    %v127 = vld [vmem:[%s0] sm:$0xff]
    %v128 = vld [vmem:[%s0 + $0x8] sm:$0xff]
    %v129 = vld [vmem:[%s0 + $0x10] sm:$0xf]
    %v130 = vld [vmem:[#allocation2] sm:$0xff]
    %v131 = vld [vmem:[#allocation2 + $0x8] sm:$0xff]
    %v132 = vld [vmem:[#allocation2 + $0x10] sm:$0xff]
    %v133 = vld [vmem:[#allocation2 + $0x18] sm:$0xff]
    %v134 = vld [vmem:[#allocation2 + $0x20] sm:$0xff]
    %v135 = vld [vmem:[#allocation2 + $0x28] sm:$0xff]
    %v136 = vld [vmem:[#allocation2 + $0x30] sm:$0xff]
    %v137 = vld [vmem:[#allocation2 + $0x38] sm:$0xff]
    %v138 = vld [vmem:[#allocation2 + $0x40] sm:$0xff]
    %v139 = vld [vmem:[#allocation2 + $0x48] sm:$0xff]
    %v140 = vld [vmem:[#allocation2 + $0x50] sm:$0xff]
    %v141 = vld [vmem:[#allocation2 + $0x58] sm:$0xff]
    %v142 = vld [vmem:[#allocation2 + $0x60] sm:$0xff]
    %v143 = vld [vmem:[#allocation2 + $0x68] sm:$0xff]
    %v144 = vld [vmem:[#allocation2 + $0x70] sm:$0xff]
    %v145 = vld [vmem:[#allocation2 + $0x78] sm:$0xff]
    %v146 = vld [vmem:[#allocation2 + $0x80] sm:$0xff]
    %v147 = vld [vmem:[#allocation2 + $0x88] sm:$0xff]
    %v148 = vld [vmem:[#allocation2 + $0x90] sm:$0xff]
    %v149 = vld [vmem:[#allocation2 + $0x98] sm:$0xff]
    %v150 = vld [vmem:[#allocation2 + $0xa0] sm:$0xff]
    %v151 = vld [vmem:[#allocation2 + $0xa8] sm:$0xff]
    %v152 = vld [vmem:[#allocation2 + $0xb0] sm:$0xff]
    %v153 = vld [vmem:[#allocation2 + $0xb8] sm:$0xff]
    %v154 = vld [vmem:[#allocation2 + $0xc0] sm:$0xff]
    %v155 = vld [vmem:[#allocation2 + $0xc8] sm:$0xff]
    %v156 = vld [vmem:[#allocation2 + $0xd0] sm:$0xff]
    %v157 = vld [vmem:[#allocation2 + $0xd8] sm:$0xff]
    %v158 = vld [vmem:[#allocation2 + $0xe0] sm:$0xff]
    %v159 = vld [vmem:[#allocation2 + $0xe8] sm:$0xff]
    %v160 = vld [vmem:[#allocation2 + $0xf0] sm:$0xff]
    %v161 = vld [vmem:[#allocation2 + $0xf8] sm:$0xff]
    %v162 = vld [vmem:[#allocation2 + $0x100] sm:$0xff]
    %v163 = vld [vmem:[#allocation2 + $0x108] sm:$0xff]
    %v164 = vld [vmem:[#allocation2 + $0x110] sm:$0xff]
    %v165 = vld [vmem:[#allocation2 + $0x118] sm:$0xff]
    %v166 = vld [vmem:[#allocation2 + $0x120] sm:$0xff]
    %v167 = vld [vmem:[#allocation2 + $0x128] sm:$0xff]
    %v168 = vld [vmem:[#allocation2 + $0x130] sm:$0xff]
    %v169 = vld [vmem:[#allocation2 + $0x138] sm:$0xff]
    %v170 = vld [vmem:[#allocation2 + $0x140] sm:$0xff]
    %v171 = vld [vmem:[#allocation2 + $0x148] sm:$0xff]
    %v172 = vld [vmem:[#allocation2 + $0x150] sm:$0xff]
    %v173 = vld [vmem:[#allocation2 + $0x158] sm:$0xff]
    %v174 = vld [vmem:[#allocation2 + $0x160] sm:$0xff]
    %v175 = vld [vmem:[#allocation2 + $0x168] sm:$0xff]
    %v176 = vld [vmem:[#allocation2 + $0x170] sm:$0xff]
    %v177 = vld [vmem:[#allocation2 + $0x178] sm:$0xff]
    %v178 = vld [vmem:[#allocation2 + $0x180] sm:$0xff]
    %v179 = vld [vmem:[#allocation2 + $0x188] sm:$0xff]
    %v180 = vld [vmem:[#allocation2 + $0x190] sm:$0xff]
    %v181 = vld [vmem:[#allocation2 + $0x198] sm:$0xff]
    %v182 = vld [vmem:[#allocation2 + $0x1a0] sm:$0xff]
    %v183 = vld [vmem:[#allocation2 + $0x1a8] sm:$0xff]
    %v184 = vld [vmem:[#allocation2 + $0x1b0] sm:$0xff]
    %v185 = vld [vmem:[#allocation2 + $0x1b8] sm:$0xff]
    %v186 = vld [vmem:[#allocation2 + $0x1c0] sm:$0xff]
    %v187 = vld [vmem:[#allocation2 + $0x1c8] sm:$0xff]
    %v188 = vld [vmem:[#allocation2 + $0x1d0] sm:$0xff]
    %v189 = vld [vmem:[#allocation2 + $0x1d8] sm:$0xff]
    %v190 = vld [vmem:[#allocation2 + $0x1e0] sm:$0xff]
    %v191 = vld [vmem:[#allocation2 + $0x1e8] sm:$0xff]
    %v192 = vld [vmem:[#allocation2 + $0x1f0] sm:$0xff]
    %v193 = vld [vmem:[#allocation2 + $0x1f8] sm:$0xff]
    %v194 = vld [vmem:[#allocation2 + $0x200] sm:$0xff]
    %v195 = vld [vmem:[#allocation2 + $0x208] sm:$0xff]
    %v196 = vld [vmem:[#allocation2 + $0x210] sm:$0xff]
    %v197 = vld [vmem:[#allocation2 + $0x218] sm:$0xff]
    %v198 = vld [vmem:[#allocation2 + $0x220] sm:$0xff]
    %v199 = vld [vmem:[#allocation2 + $0x228] sm:$0xff]
    %v200 = vld [vmem:[#allocation2 + $0x230] sm:$0xff]
    %v201 = vld [vmem:[#allocation2 + $0x238] sm:$0xff]
    %v202 = vld [vmem:[#allocation2 + $0x240] sm:$0xff]
    %v203 = vld [vmem:[#allocation2 + $0x248] sm:$0xff]
    %v204 = vld [vmem:[#allocation2 + $0x250] sm:$0xff]
    %v205 = vld [vmem:[#allocation2 + $0x258] sm:$0xff]
    %v206 = vld [vmem:[#allocation2 + $0x260] sm:$0xff]
    %v207 = vld [vmem:[#allocation2 + $0x268] sm:$0xff]
    %v208 = vld [vmem:[#allocation2 + $0x270] sm:$0xff]
    %v209 = vld [vmem:[#allocation2 + $0x278] sm:$0xff]
    %v210 = vld [vmem:[%s3] sm:$0x3]
    %v212 = vperm.slane %v210, 0
    %v213 = vperm.slane %v210, 1
    %v219 = vunpack.c.l.b16 %v127
    %v220 = vunpack.c.h.b16 %v127
    %v221 = vunpack.c.l.b16 %v128
    %v222 = vunpack.c.h.b16 %v128
    %v223 = vunpack.c.l.b16 %v129
    %v224 = vpack.c.b16 %v219, %v219
    %v225 = vpack.c.b16 %v220, %v220
    %v226 = vpack.c.b16 %v221, %v221
    %v227 = vpack.c.b16 %v222, %v222
    %v228 = vpack.c.b16 %v223, %v223
    %v314 = vunpack.c.l.b16 %v130
    %v315 = vunpack.c.h.b16 %v130
    %v316 = vunpack.c.l.b16 %v131
    %v317 = vunpack.c.h.b16 %v131
    %v318 = vunpack.c.l.b16 %v132
    %v319 = vunpack.c.h.b16 %v132
    %v320 = vunpack.c.l.b16 %v133
    %v321 = vunpack.c.h.b16 %v133
    %v322 = vunpack.c.l.b16 %v134
    %v323 = vunpack.c.h.b16 %v134
    %v324 = vunpack.c.l.b16 %v135
    %v325 = vunpack.c.h.b16 %v135
    %v326 = vunpack.c.l.b16 %v136
    %v327 = vunpack.c.h.b16 %v136
    %v328 = vunpack.c.l.b16 %v137
    %v329 = vunpack.c.h.b16 %v137
    %v330 = vunpack.c.l.b16 %v138
    %v331 = vunpack.c.h.b16 %v138
    %v332 = vunpack.c.l.b16 %v139
    %v333 = vunpack.c.h.b16 %v139
    %v334 = vunpack.c.l.b16 %v140
    %v335 = vunpack.c.h.b16 %v140
    %v336 = vunpack.c.l.b16 %v141
    %v337 = vunpack.c.h.b16 %v141
    %v338 = vunpack.c.l.b16 %v142
    %v339 = vunpack.c.h.b16 %v142
    %v340 = vunpack.c.l.b16 %v143
    %v341 = vunpack.c.h.b16 %v143
    %v342 = vunpack.c.l.b16 %v144
    %v343 = vunpack.c.h.b16 %v144
    %v344 = vunpack.c.l.b16 %v145
    %v345 = vunpack.c.h.b16 %v145
    %v346 = vunpack.c.l.b16 %v146
    %v347 = vunpack.c.h.b16 %v146
    %v348 = vunpack.c.l.b16 %v147
    %v349 = vunpack.c.h.b16 %v147
    %v350 = vunpack.c.l.b16 %v148
    %v351 = vunpack.c.h.b16 %v148
    %v352 = vunpack.c.l.b16 %v149
    %v353 = vunpack.c.h.b16 %v149
    %v354 = vunpack.c.l.b16 %v150
    %v355 = vunpack.c.h.b16 %v150
    %v356 = vunpack.c.l.b16 %v151
    %v357 = vunpack.c.h.b16 %v151
    %v358 = vunpack.c.l.b16 %v152
    %v359 = vunpack.c.h.b16 %v152
    %v360 = vunpack.c.l.b16 %v153
    %v361 = vunpack.c.h.b16 %v153
    %v362 = vunpack.c.l.b16 %v154
    %v363 = vunpack.c.h.b16 %v154
    %v364 = vunpack.c.l.b16 %v155
    %v365 = vunpack.c.h.b16 %v155
    %v366 = vunpack.c.l.b16 %v156
    %v367 = vunpack.c.h.b16 %v156
    %v368 = vunpack.c.l.b16 %v157
    %v369 = vunpack.c.h.b16 %v157
    %v370 = vunpack.c.l.b16 %v158
    %v371 = vunpack.c.h.b16 %v158
    %v372 = vunpack.c.l.b16 %v159
    %v373 = vunpack.c.h.b16 %v159
    %v374 = vunpack.c.l.b16 %v160
    %v375 = vunpack.c.h.b16 %v160
    %v376 = vunpack.c.l.b16 %v161
    %v377 = vunpack.c.h.b16 %v161
    %v378 = vunpack.c.l.b16 %v162
    %v379 = vunpack.c.h.b16 %v162
    %v380 = vunpack.c.l.b16 %v163
    %v381 = vunpack.c.h.b16 %v163
    %v382 = vunpack.c.l.b16 %v164
    %v383 = vunpack.c.h.b16 %v164
    %v384 = vunpack.c.l.b16 %v165
    %v385 = vunpack.c.h.b16 %v165
    %v386 = vunpack.c.l.b16 %v166
    %v387 = vunpack.c.h.b16 %v166
    %v388 = vunpack.c.l.b16 %v167
    %v389 = vunpack.c.h.b16 %v167
    %v390 = vunpack.c.l.b16 %v168
    %v391 = vunpack.c.h.b16 %v168
    %v392 = vunpack.c.l.b16 %v169
    %v393 = vunpack.c.h.b16 %v169
    %v394 = vunpack.c.l.b16 %v170
    %v395 = vunpack.c.h.b16 %v170
    %v396 = vunpack.c.l.b16 %v171
    %v397 = vunpack.c.h.b16 %v171
    %v398 = vunpack.c.l.b16 %v172
    %v399 = vunpack.c.h.b16 %v172
    %v400 = vunpack.c.l.b16 %v173
    %v401 = vunpack.c.h.b16 %v173
    %v402 = vunpack.c.l.b16 %v174
    %v403 = vunpack.c.h.b16 %v174
    %v404 = vunpack.c.l.b16 %v175
    %v405 = vunpack.c.h.b16 %v175
    %v406 = vunpack.c.l.b16 %v176
    %v407 = vunpack.c.h.b16 %v176
    %v408 = vunpack.c.l.b16 %v177
    %v409 = vunpack.c.h.b16 %v177
    %v410 = vunpack.c.l.b16 %v178
    %v411 = vunpack.c.h.b16 %v178
    %v412 = vunpack.c.l.b16 %v179
    %v413 = vunpack.c.h.b16 %v179
    %v414 = vunpack.c.l.b16 %v180
    %v415 = vunpack.c.h.b16 %v180
    %v416 = vunpack.c.l.b16 %v181
    %v417 = vunpack.c.h.b16 %v181
    %v418 = vunpack.c.l.b16 %v182
    %v419 = vunpack.c.h.b16 %v182
    %v420 = vunpack.c.l.b16 %v183
    %v421 = vunpack.c.h.b16 %v183
    %v422 = vunpack.c.l.b16 %v184
    %v423 = vunpack.c.h.b16 %v184
    %v424 = vunpack.c.l.b16 %v185
    %v425 = vunpack.c.h.b16 %v185
    %v426 = vunpack.c.l.b16 %v186
    %v427 = vunpack.c.h.b16 %v186
    %v428 = vunpack.c.l.b16 %v187
    %v429 = vunpack.c.h.b16 %v187
    %v430 = vunpack.c.l.b16 %v188
    %v431 = vunpack.c.h.b16 %v188
    %v432 = vunpack.c.l.b16 %v189
    %v433 = vunpack.c.h.b16 %v189
    %v434 = vunpack.c.l.b16 %v190
    %v435 = vunpack.c.h.b16 %v190
    %v436 = vunpack.c.l.b16 %v191
    %v437 = vunpack.c.h.b16 %v191
    %v438 = vunpack.c.l.b16 %v192
    %v439 = vunpack.c.h.b16 %v192
    %v440 = vunpack.c.l.b16 %v193
    %v441 = vunpack.c.h.b16 %v193
    %v442 = vunpack.c.l.b16 %v194
    %v443 = vunpack.c.h.b16 %v194
    %v444 = vunpack.c.l.b16 %v195
    %v445 = vunpack.c.h.b16 %v195
    %v446 = vunpack.c.l.b16 %v196
    %v447 = vunpack.c.h.b16 %v196
    %v448 = vunpack.c.l.b16 %v197
    %v449 = vunpack.c.h.b16 %v197
    %v450 = vunpack.c.l.b16 %v198
    %v451 = vunpack.c.h.b16 %v198
    %v452 = vunpack.c.l.b16 %v199
    %v453 = vunpack.c.h.b16 %v199
    %v454 = vunpack.c.l.b16 %v200
    %v455 = vunpack.c.h.b16 %v200
    %v456 = vunpack.c.l.b16 %v201
    %v457 = vunpack.c.h.b16 %v201
    %v458 = vunpack.c.l.b16 %v202
    %v459 = vunpack.c.h.b16 %v202
    %v460 = vunpack.c.l.b16 %v203
    %v461 = vunpack.c.h.b16 %v203
    %v462 = vunpack.c.l.b16 %v204
    %v463 = vunpack.c.h.b16 %v204
    %v464 = vunpack.c.l.b16 %v205
    %v465 = vunpack.c.h.b16 %v205
    %v466 = vunpack.c.l.b16 %v206
    %v467 = vunpack.c.h.b16 %v206
    %v468 = vunpack.c.l.b16 %v207
    %v469 = vunpack.c.h.b16 %v207
    %v470 = vunpack.c.l.b16 %v208
    %v471 = vunpack.c.h.b16 %v208
    %v472 = vunpack.c.l.b16 %v209
    %v473 = vunpack.c.h.b16 %v209
    %v474 = vpack.c.b16 %v316, %v314
    %v475 = vpack.c.b16 %v317, %v315
    %v476 = vpack.c.b16 %v320, %v318
    %v477 = vpack.c.b16 %v321, %v319
    %v478 = vpack.c.b16 %v324, %v322
    %v479 = vpack.c.b16 %v325, %v323
    %v480 = vpack.c.b16 %v328, %v326
    %v481 = vpack.c.b16 %v329, %v327
    %v482 = vpack.c.b16 %v332, %v330
    %v483 = vpack.c.b16 %v333, %v331
    %v484 = vpack.c.b16 %v336, %v334
    %v485 = vpack.c.b16 %v337, %v335
    %v486 = vpack.c.b16 %v340, %v338
    %v487 = vpack.c.b16 %v341, %v339
    %v488 = vpack.c.b16 %v344, %v342
    %v489 = vpack.c.b16 %v345, %v343
    %v490 = vpack.c.b16 %v348, %v346
    %v491 = vpack.c.b16 %v349, %v347
    %v492 = vpack.c.b16 %v352, %v350
    %v493 = vpack.c.b16 %v353, %v351
    %v494 = vpack.c.b16 %v356, %v354
    %v495 = vpack.c.b16 %v357, %v355
    %v496 = vpack.c.b16 %v360, %v358
    %v497 = vpack.c.b16 %v361, %v359
    %v498 = vpack.c.b16 %v364, %v362
    %v499 = vpack.c.b16 %v365, %v363
    %v500 = vpack.c.b16 %v368, %v366
    %v501 = vpack.c.b16 %v369, %v367
    %v502 = vpack.c.b16 %v372, %v370
    %v503 = vpack.c.b16 %v373, %v371
    %v504 = vpack.c.b16 %v376, %v374
    %v505 = vpack.c.b16 %v377, %v375
    %v506 = vpack.c.b16 %v380, %v378
    %v507 = vpack.c.b16 %v381, %v379
    %v508 = vpack.c.b16 %v384, %v382
    %v509 = vpack.c.b16 %v385, %v383
    %v510 = vpack.c.b16 %v388, %v386
    %v511 = vpack.c.b16 %v389, %v387
    %v512 = vpack.c.b16 %v392, %v390
    %v513 = vpack.c.b16 %v393, %v391
    %v514 = vpack.c.b16 %v396, %v394
    %v515 = vpack.c.b16 %v397, %v395
    %v516 = vpack.c.b16 %v400, %v398
    %v517 = vpack.c.b16 %v401, %v399
    %v518 = vpack.c.b16 %v404, %v402
    %v519 = vpack.c.b16 %v405, %v403
    %v520 = vpack.c.b16 %v408, %v406
    %v521 = vpack.c.b16 %v409, %v407
    %v522 = vpack.c.b16 %v412, %v410
    %v523 = vpack.c.b16 %v413, %v411
    %v524 = vpack.c.b16 %v416, %v414
    %v525 = vpack.c.b16 %v417, %v415
    %v526 = vpack.c.b16 %v420, %v418
    %v527 = vpack.c.b16 %v421, %v419
    %v528 = vpack.c.b16 %v424, %v422
    %v529 = vpack.c.b16 %v425, %v423
    %v530 = vpack.c.b16 %v428, %v426
    %v531 = vpack.c.b16 %v429, %v427
    %v532 = vpack.c.b16 %v432, %v430
    %v533 = vpack.c.b16 %v433, %v431
    %v534 = vpack.c.b16 %v436, %v434
    %v535 = vpack.c.b16 %v437, %v435
    %v536 = vpack.c.b16 %v440, %v438
    %v537 = vpack.c.b16 %v441, %v439
    %v538 = vpack.c.b16 %v444, %v442
    %v539 = vpack.c.b16 %v445, %v443
    %v540 = vpack.c.b16 %v448, %v446
    %v541 = vpack.c.b16 %v449, %v447
    %v542 = vpack.c.b16 %v452, %v450
    %v543 = vpack.c.b16 %v453, %v451
    %v544 = vpack.c.b16 %v456, %v454
    %v545 = vpack.c.b16 %v457, %v455
    %v546 = vpack.c.b16 %v460, %v458
    %v547 = vpack.c.b16 %v461, %v459
    %v548 = vpack.c.b16 %v464, %v462
    %v549 = vpack.c.b16 %v465, %v463
    %v550 = vpack.c.b16 %v468, %v466
    %v551 = vpack.c.b16 %v469, %v467
    %v552 = vpack.c.b16 %v472, %v470
    %v553 = vpack.c.b16 %v473, %v471
    %634 = vmatpush.bf16.msra.mxu0 %v488
    %635 = vmatpush.bf16.msra.mxu0 %v486
    %636 = vmatpush.bf16.msra.mxu0 %v484
    %637 = vmatpush.bf16.msra.mxu0 %v482
    %638 = vmatpush.bf16.msra.mxu0 %v480
    %639 = vmatpush.bf16.msra.mxu0 %v478
    %640 = vmatpush.bf16.msra.mxu0 %v476
    %641 = vmatpush.bf16.msra.mxu0 %v474
    %642 = vmatmul.bf16.gmra.mxu0 %v224
    %v643 = vpop.f32.mrf.mxu0
    %v644 = vadd.f32 %v212, %v643
    %v645 = vpop.f32.mrf.mxu0
    %646 = vdwg.mxu0
    %647 = vmatpush.bf16.msra.mxu0 %v504
    %648 = vmatpush.bf16.msra.mxu0 %v502
    %649 = vmatpush.bf16.msra.mxu0 %v500
    %650 = vmatpush.bf16.msra.mxu0 %v498
    %651 = vmatpush.bf16.msra.mxu0 %v496
    %652 = vmatpush.bf16.msra.mxu0 %v494
    %653 = vmatpush.bf16.msra.mxu0 %v492
    %654 = vmatpush.bf16.msra.mxu0 %v490
    %655 = vmatmul.bf16.gmra.mxu0 %v225
    %v656 = vpop.f32.mrf.mxu0
    %v657 = vadd.f32 %v644, %v656
    %v658 = vpop.f32.mrf.mxu0
    %659 = vdwg.mxu0
    %660 = vmatpush.bf16.msra.mxu0 %v520
    %661 = vmatpush.bf16.msra.mxu0 %v518
    %662 = vmatpush.bf16.msra.mxu0 %v516
    %663 = vmatpush.bf16.msra.mxu0 %v514
    %664 = vmatpush.bf16.msra.mxu0 %v512
    %665 = vmatpush.bf16.msra.mxu0 %v510
    %666 = vmatpush.bf16.msra.mxu0 %v508
    %667 = vmatpush.bf16.msra.mxu0 %v506
    %668 = vmatmul.bf16.gmra.mxu0 %v226
    %v669 = vpop.f32.mrf.mxu0
    %v670 = vadd.f32 %v657, %v669
    %v671 = vpop.f32.mrf.mxu0
    %672 = vdwg.mxu0
    %673 = vmatpush.bf16.msra.mxu0 %v536
    %674 = vmatpush.bf16.msra.mxu0 %v534
    %675 = vmatpush.bf16.msra.mxu0 %v532
    %676 = vmatpush.bf16.msra.mxu0 %v530
    %677 = vmatpush.bf16.msra.mxu0 %v528
    %678 = vmatpush.bf16.msra.mxu0 %v526
    %679 = vmatpush.bf16.msra.mxu0 %v524
    %680 = vmatpush.bf16.msra.mxu0 %v522
    %681 = vmatmul.bf16.gmra.mxu0 %v227
    %v682 = vpop.f32.mrf.mxu0
    %v683 = vadd.f32 %v670, %v682
    %v684 = vpop.f32.mrf.mxu0
    %685 = vdwg.mxu0
    %686 = vmatpush.bf16.msra.mxu0 %v552
    %687 = vmatpush.bf16.msra.mxu0 %v550
    %688 = vmatpush.bf16.msra.mxu0 %v548
    %689 = vmatpush.bf16.msra.mxu0 %v546
    %690 = vmatpush.bf16.msra.mxu0 %v544
    %691 = vmatpush.bf16.msra.mxu0 %v542
    %692 = vmatpush.bf16.msra.mxu0 %v540
    %693 = vmatpush.bf16.msra.mxu0 %v538
    %694 = vmatmul.bf16.gmra.mxu0 %v228
    %v695 = vpop.f32.mrf.mxu0
    %v696 = vadd.f32 %v683, %v695
    %v697 = vpop.f32.mrf.mxu0
    %698 = vdwg.mxu0
    %699 = vmatpush.bf16.msra.mxu0 %v489
    %700 = vmatpush.bf16.msra.mxu0 %v487
    %701 = vmatpush.bf16.msra.mxu0 %v485
    %702 = vmatpush.bf16.msra.mxu0 %v483
    %703 = vmatpush.bf16.msra.mxu0 %v481
    %704 = vmatpush.bf16.msra.mxu0 %v479
    %705 = vmatpush.bf16.msra.mxu0 %v477
    %706 = vmatpush.bf16.msra.mxu0 %v475
    %707 = vmatmul.bf16.gmra.mxu0 %v224
    %v708 = vpop.f32.mrf.mxu0
    %v709 = vadd.f32 %v213, %v708
    %v710 = vpop.f32.mrf.mxu0
    %711 = vdwg.mxu0
    %712 = vmatpush.bf16.msra.mxu0 %v505
    %713 = vmatpush.bf16.msra.mxu0 %v503
    %714 = vmatpush.bf16.msra.mxu0 %v501
    %715 = vmatpush.bf16.msra.mxu0 %v499
    %716 = vmatpush.bf16.msra.mxu0 %v497
    %717 = vmatpush.bf16.msra.mxu0 %v495
    %718 = vmatpush.bf16.msra.mxu0 %v493
    %719 = vmatpush.bf16.msra.mxu0 %v491
    %720 = vmatmul.bf16.gmra.mxu0 %v225
    %v721 = vpop.f32.mrf.mxu0
    %v722 = vadd.f32 %v709, %v721
    %v723 = vpop.f32.mrf.mxu0
    %724 = vdwg.mxu0
    %725 = vmatpush.bf16.msra.mxu0 %v521
    %726 = vmatpush.bf16.msra.mxu0 %v519
    %727 = vmatpush.bf16.msra.mxu0 %v517
    %728 = vmatpush.bf16.msra.mxu0 %v515
    %729 = vmatpush.bf16.msra.mxu0 %v513
    %730 = vmatpush.bf16.msra.mxu0 %v511
    %731 = vmatpush.bf16.msra.mxu0 %v509
    %732 = vmatpush.bf16.msra.mxu0 %v507
    %733 = vmatmul.bf16.gmra.mxu0 %v226
    %v734 = vpop.f32.mrf.mxu0
    %v735 = vadd.f32 %v722, %v734
    %v736 = vpop.f32.mrf.mxu0
    %737 = vdwg.mxu0
    %738 = vmatpush.bf16.msra.mxu0 %v537
    %739 = vmatpush.bf16.msra.mxu0 %v535
    %740 = vmatpush.bf16.msra.mxu0 %v533
    %741 = vmatpush.bf16.msra.mxu0 %v531
    %742 = vmatpush.bf16.msra.mxu0 %v529
    %743 = vmatpush.bf16.msra.mxu0 %v527
    %744 = vmatpush.bf16.msra.mxu0 %v525
    %745 = vmatpush.bf16.msra.mxu0 %v523
    %746 = vmatmul.bf16.gmra.mxu0 %v227
    %v747 = vpop.f32.mrf.mxu0
    %v748 = vadd.f32 %v735, %v747
    %v749 = vpop.f32.mrf.mxu0
    %750 = vdwg.mxu0
    %751 = vmatpush.bf16.msra.mxu0 %v553
    %752 = vmatpush.bf16.msra.mxu0 %v551
    %753 = vmatpush.bf16.msra.mxu0 %v549
    %754 = vmatpush.bf16.msra.mxu0 %v547
    %755 = vmatpush.bf16.msra.mxu0 %v545
    %756 = vmatpush.bf16.msra.mxu0 %v543
    %757 = vmatpush.bf16.msra.mxu0 %v541
    %758 = vmatpush.bf16.msra.mxu0 %v539
    %759 = vmatmul.bf16.gmra.mxu0 %v228
    %v760 = vpop.f32.mrf.mxu0
    %v761 = vadd.f32 %v748, %v760
    %v762 = vpop.f32.mrf.mxu0
    %763 = vdwg.mxu0
    %v764 = vmax.f32 %v696, 0.0
    %v765 = vmax.f32 %v761, 0.0
    %v766 = vpack.c.bf16 %v764, %v764
    %v767 = vpack.c.bf16 %v765, %v765
    %v768 = vld [vmem:[#allocation4] sm:$0xf]
    %v769 = vld [vmem:[#allocation4 + $0x4] sm:$0xf]
    %v770 = vld [vmem:[#allocation4 + $0x8] sm:$0xf]
    %v771 = vld [vmem:[#allocation4 + $0xc] sm:$0xf]
    %v772 = vld [vmem:[#allocation4 + $0x10] sm:$0xf]
    %v773 = vld [vmem:[#allocation4 + $0x14] sm:$0xf]
    %v774 = vld [vmem:[#allocation4 + $0x18] sm:$0xf]
    %v775 = vld [vmem:[#allocation4 + $0x1c] sm:$0xf]
    %v776 = vld [vmem:[#allocation4 + $0x20] sm:$0xf]
    %v777 = vld [vmem:[#allocation4 + $0x24] sm:$0xf]
    %v778 = vld [vmem:[#allocation4 + $0x28] sm:$0xf]
    %v779 = vld [vmem:[#allocation4 + $0x2c] sm:$0xf]
    %v780 = vld [vmem:[#allocation4 + $0x30] sm:$0xf]
    %v781 = vld [vmem:[#allocation4 + $0x34] sm:$0xf]
    %v782 = vld [vmem:[#allocation4 + $0x38] sm:$0xf]
    %v783 = vld [vmem:[#allocation4 + $0x3c] sm:$0xf]
    %v784 = vld [vmem:[#allocation4 + $0x40] sm:$0xf]
    %v785 = vld [vmem:[#allocation4 + $0x44] sm:$0xf]
    %v786 = vld [vmem:[#allocation4 + $0x48] sm:$0xf]
    %v787 = vld [vmem:[#allocation4 + $0x4c] sm:$0xf]
    %v788 = vld [vmem:[#allocation4 + $0x50] sm:$0xf]
    %v789 = vld [vmem:[#allocation4 + $0x54] sm:$0xf]
    %v790 = vld [vmem:[#allocation4 + $0x58] sm:$0xf]
    %v791 = vld [vmem:[#allocation4 + $0x5c] sm:$0xf]
    %v792 = vld [vmem:[#allocation4 + $0x60] sm:$0xf]
    %v793 = vld [vmem:[#allocation4 + $0x64] sm:$0xf]
    %v794 = vld [vmem:[#allocation4 + $0x68] sm:$0xf]
    %v795 = vld [vmem:[#allocation4 + $0x6c] sm:$0xf]
    %v796 = vld [vmem:[#allocation4 + $0x70] sm:$0xf]
    %v797 = vld [vmem:[#allocation4 + $0x74] sm:$0xf]
    %v798 = vld [vmem:[#allocation4 + $0x78] sm:$0xf]
    %v799 = vld [vmem:[#allocation4 + $0x7c] sm:$0xf]
    %v800 = vld [vmem:[%s5] sm:$0x1]
    %v802 = vperm.slane %v800, 0
    %v836 = vunpack.c.l.b16 %v768
    %v837 = vunpack.c.l.b16 %v769
    %v838 = vunpack.c.l.b16 %v770
    %v839 = vunpack.c.l.b16 %v771
    %v840 = vunpack.c.l.b16 %v772
    %v841 = vunpack.c.l.b16 %v773
    %v842 = vunpack.c.l.b16 %v774
    %v843 = vunpack.c.l.b16 %v775
    %v844 = vunpack.c.l.b16 %v776
    %v845 = vunpack.c.l.b16 %v777
    %v846 = vunpack.c.l.b16 %v778
    %v847 = vunpack.c.l.b16 %v779
    %v848 = vunpack.c.l.b16 %v780
    %v849 = vunpack.c.l.b16 %v781
    %v850 = vunpack.c.l.b16 %v782
    %v851 = vunpack.c.l.b16 %v783
    %v852 = vunpack.c.l.b16 %v784
    %v853 = vunpack.c.l.b16 %v785
    %v854 = vunpack.c.l.b16 %v786
    %v855 = vunpack.c.l.b16 %v787
    %v856 = vunpack.c.l.b16 %v788
    %v857 = vunpack.c.l.b16 %v789
    %v858 = vunpack.c.l.b16 %v790
    %v859 = vunpack.c.l.b16 %v791
    %v860 = vunpack.c.l.b16 %v792
    %v861 = vunpack.c.l.b16 %v793
    %v862 = vunpack.c.l.b16 %v794
    %v863 = vunpack.c.l.b16 %v795
    %v864 = vunpack.c.l.b16 %v796
    %v865 = vunpack.c.l.b16 %v797
    %v866 = vunpack.c.l.b16 %v798
    %v867 = vunpack.c.l.b16 %v799
    %v868 = vpack.c.b16 %v837, %v836
    %v869 = vpack.c.b16 %v839, %v838
    %v870 = vpack.c.b16 %v841, %v840
    %v871 = vpack.c.b16 %v843, %v842
    %v872 = vpack.c.b16 %v845, %v844
    %v873 = vpack.c.b16 %v847, %v846
    %v874 = vpack.c.b16 %v849, %v848
    %v875 = vpack.c.b16 %v851, %v850
    %v876 = vpack.c.b16 %v853, %v852
    %v877 = vpack.c.b16 %v855, %v854
    %v878 = vpack.c.b16 %v857, %v856
    %v879 = vpack.c.b16 %v859, %v858
    %v880 = vpack.c.b16 %v861, %v860
    %v881 = vpack.c.b16 %v863, %v862
    %v882 = vpack.c.b16 %v865, %v864
    %v883 = vpack.c.b16 %v867, %v866
    %900 = vmatpush.bf16.msra.mxu0 %v875
    %901 = vmatpush.bf16.msra.mxu0 %v874
    %902 = vmatpush.bf16.msra.mxu0 %v873
    %903 = vmatpush.bf16.msra.mxu0 %v872
    %904 = vmatpush.bf16.msra.mxu0 %v871
    %905 = vmatpush.bf16.msra.mxu0 %v870
    %906 = vmatpush.bf16.msra.mxu0 %v869
    %907 = vmatpush.bf16.msra.mxu0 %v868
    %908 = vmatmul.bf16.gmra.mxu0 %v766
    %v909 = vpop.f32.mrf.mxu0
    %v910 = vadd.f32 %v802, %v909
    %v911 = vpop.f32.mrf.mxu0
    %912 = vdwg.mxu0
    %913 = vmatpush.bf16.msra.mxu0 %v883
    %914 = vmatpush.bf16.msra.mxu0 %v882
    %915 = vmatpush.bf16.msra.mxu0 %v881
    %916 = vmatpush.bf16.msra.mxu0 %v880
    %917 = vmatpush.bf16.msra.mxu0 %v879
    %918 = vmatpush.bf16.msra.mxu0 %v878
    %919 = vmatpush.bf16.msra.mxu0 %v877
    %920 = vmatpush.bf16.msra.mxu0 %v876
    %921 = vmatmul.bf16.gmra.mxu0 %v767
    %v922 = vpop.f32.mrf.mxu0
    %v923 = vadd.f32 %v910, %v922
    %v924 = vpop.f32.mrf.mxu0
    %925 = vdwg.mxu0
    %v926 = vmax.f32 %v923, 0.0
    %v927 = vpack.c.bf16 %v926, %v926
    %v928 = vld [vmem:[#allocation6] sm:$0xff]
    %v929 = vld [vmem:[#allocation6 + $0x8] sm:$0xff]
    %v930 = vld [vmem:[#allocation6 + $0x10] sm:$0xff]
    %v931 = vld [vmem:[#allocation6 + $0x18] sm:$0xff]
    %v932 = vld [vmem:[#allocation6 + $0x20] sm:$0xff]
    %v933 = vld [vmem:[#allocation6 + $0x28] sm:$0xff]
    %v934 = vld [vmem:[#allocation6 + $0x30] sm:$0xff]
    %v935 = vld [vmem:[#allocation6 + $0x38] sm:$0xff]
    %v936 = vld [vmem:[#allocation6 + $0x40] sm:$0xff]
    %v937 = vld [vmem:[#allocation6 + $0x48] sm:$0xff]
    %v938 = vld [vmem:[#allocation6 + $0x50] sm:$0xff]
    %v939 = vld [vmem:[#allocation6 + $0x58] sm:$0xff]
    %v940 = vld [vmem:[#allocation6 + $0x60] sm:$0xff]
    %v941 = vld [vmem:[#allocation6 + $0x68] sm:$0xff]
    %v942 = vld [vmem:[#allocation6 + $0x70] sm:$0xff]
    %v943 = vld [vmem:[#allocation6 + $0x78] sm:$0xff]
    %v944 = vld [vmem:[%s7] sm:$0x3]
    %v946 = vperm.slane %v944, 0
    %v947 = vperm.slane %v944, 1
    %v966 = vunpack.c.l.b16 %v928
    %v967 = vunpack.c.h.b16 %v928
    %v968 = vunpack.c.l.b16 %v929
    %v969 = vunpack.c.h.b16 %v929
    %v970 = vunpack.c.l.b16 %v930
    %v971 = vunpack.c.h.b16 %v930
    %v972 = vunpack.c.l.b16 %v931
    %v973 = vunpack.c.h.b16 %v931
    %v974 = vunpack.c.l.b16 %v932
    %v975 = vunpack.c.h.b16 %v932
    %v976 = vunpack.c.l.b16 %v933
    %v977 = vunpack.c.h.b16 %v933
    %v978 = vunpack.c.l.b16 %v934
    %v979 = vunpack.c.h.b16 %v934
    %v980 = vunpack.c.l.b16 %v935
    %v981 = vunpack.c.h.b16 %v935
    %v982 = vunpack.c.l.b16 %v936
    %v983 = vunpack.c.h.b16 %v936
    %v984 = vunpack.c.l.b16 %v937
    %v985 = vunpack.c.h.b16 %v937
    %v986 = vunpack.c.l.b16 %v938
    %v987 = vunpack.c.h.b16 %v938
    %v988 = vunpack.c.l.b16 %v939
    %v989 = vunpack.c.h.b16 %v939
    %v990 = vunpack.c.l.b16 %v940
    %v991 = vunpack.c.h.b16 %v940
    %v992 = vunpack.c.l.b16 %v941
    %v993 = vunpack.c.h.b16 %v941
    %v994 = vunpack.c.l.b16 %v942
    %v995 = vunpack.c.h.b16 %v942
    %v996 = vunpack.c.l.b16 %v943
    %v997 = vunpack.c.h.b16 %v943
    %v998 = vpack.c.b16 %v968, %v966
    %v999 = vpack.c.b16 %v969, %v967
    %v1000 = vpack.c.b16 %v972, %v970
    %v1001 = vpack.c.b16 %v973, %v971
    %v1002 = vpack.c.b16 %v976, %v974
    %v1003 = vpack.c.b16 %v977, %v975
    %v1004 = vpack.c.b16 %v980, %v978
    %v1005 = vpack.c.b16 %v981, %v979
    %v1006 = vpack.c.b16 %v984, %v982
    %v1007 = vpack.c.b16 %v985, %v983
    %v1008 = vpack.c.b16 %v988, %v986
    %v1009 = vpack.c.b16 %v989, %v987
    %v1010 = vpack.c.b16 %v992, %v990
    %v1011 = vpack.c.b16 %v993, %v991
    %v1012 = vpack.c.b16 %v996, %v994
    %v1013 = vpack.c.b16 %v997, %v995
    %1030 = vmatpush.bf16.msra.mxu0 %v1012
    %1031 = vmatpush.bf16.msra.mxu0 %v1010
    %1032 = vmatpush.bf16.msra.mxu0 %v1008
    %1033 = vmatpush.bf16.msra.mxu0 %v1006
    %1034 = vmatpush.bf16.msra.mxu0 %v1004
    %1035 = vmatpush.bf16.msra.mxu0 %v1002
    %1036 = vmatpush.bf16.msra.mxu0 %v1000
    %1037 = vmatpush.bf16.msra.mxu0 %v998
    %1038 = vmatmul.bf16.gmra.mxu0 %v927
    %v1039 = vpop.f32.mrf.mxu0
    %v1040 = vadd.f32 %v946, %v1039
    %v1041 = vpop.f32.mrf.mxu0
    %1042 = vdwg.mxu0
    %1043 = vmatpush.bf16.msra.mxu0 %v1013
    %1044 = vmatpush.bf16.msra.mxu0 %v1011
    %1045 = vmatpush.bf16.msra.mxu0 %v1009
    %1046 = vmatpush.bf16.msra.mxu0 %v1007
    %1047 = vmatpush.bf16.msra.mxu0 %v1005
    %1048 = vmatpush.bf16.msra.mxu0 %v1003
    %1049 = vmatpush.bf16.msra.mxu0 %v1001
    %1050 = vmatpush.bf16.msra.mxu0 %v999
    %1051 = vmatmul.bf16.gmra.mxu0 %v927
    %v1052 = vpop.f32.mrf.mxu0
    %v1053 = vadd.f32 %v947, %v1052
    %v1054 = vpop.f32.mrf.mxu0
    %1055 = vdwg.mxu0
    %v1056 = vmul.f32 %v1053, 0.5
    %v1057 = vmul.f32 %v1056, 1.442695
    %v1058 = vpow.pop %v1057
    %v1059 = vld [vmem:[%s1] sm:$0xff]
    %v1060 = vmul.f32 %v1059, %v1058
    %v1061 = vadd.f32 %v1040, %v1060
    %v1062 = vpack.c.bf16 %v1061, %v1061
    %v1063 = vld [vmem:[%s8] sm:$0xf]
    %v1064 = vld [vmem:[%s8 + $0x4] sm:$0xf]
    %v1065 = vld [vmem:[%s8 + $0x8] sm:$0xf]
    %v1066 = vld [vmem:[%s8 + $0xc] sm:$0xf]
    %v1067 = vld [vmem:[%s8 + $0x10] sm:$0xf]
    %v1068 = vld [vmem:[%s8 + $0x14] sm:$0xf]
    %v1069 = vld [vmem:[%s8 + $0x18] sm:$0xf]
    %v1070 = vld [vmem:[%s8 + $0x1c] sm:$0xf]
    %v1071 = vld [vmem:[%s8 + $0x20] sm:$0xf]
    %v1072 = vld [vmem:[%s8 + $0x24] sm:$0xf]
    %v1073 = vld [vmem:[%s8 + $0x28] sm:$0xf]
    %v1074 = vld [vmem:[%s8 + $0x2c] sm:$0xf]
    %v1075 = vld [vmem:[%s8 + $0x30] sm:$0xf]
    %v1076 = vld [vmem:[%s8 + $0x34] sm:$0xf]
    %v1077 = vld [vmem:[%s8 + $0x38] sm:$0xf]
    %v1078 = vld [vmem:[%s8 + $0x3c] sm:$0xf]
    %v1079 = vld [vmem:[%s9] sm:$0x1]
    %v1081 = vperm.slane %v1079, 0
    %v1099 = vunpack.c.l.b16 %v1063
    %v1100 = vunpack.c.l.b16 %v1064
    %v1101 = vunpack.c.l.b16 %v1065
    %v1102 = vunpack.c.l.b16 %v1066
    %v1103 = vunpack.c.l.b16 %v1067
    %v1104 = vunpack.c.l.b16 %v1068
    %v1105 = vunpack.c.l.b16 %v1069
    %v1106 = vunpack.c.l.b16 %v1070
    %v1107 = vunpack.c.l.b16 %v1071
    %v1108 = vunpack.c.l.b16 %v1072
    %v1109 = vunpack.c.l.b16 %v1073
    %v1110 = vunpack.c.l.b16 %v1074
    %v1111 = vunpack.c.l.b16 %v1075
    %v1112 = vunpack.c.l.b16 %v1076
    %v1113 = vunpack.c.l.b16 %v1077
    %v1114 = vunpack.c.l.b16 %v1078
    %v1115 = vpack.c.b16 %v1100, %v1099
    %v1116 = vpack.c.b16 %v1102, %v1101
    %v1117 = vpack.c.b16 %v1104, %v1103
    %v1118 = vpack.c.b16 %v1106, %v1105
    %v1119 = vpack.c.b16 %v1108, %v1107
    %v1120 = vpack.c.b16 %v1110, %v1109
    %v1121 = vpack.c.b16 %v1112, %v1111
    %v1122 = vpack.c.b16 %v1114, %v1113
    %1131 = vmatpush.bf16.msra.mxu0 %v1122
    %1132 = vmatpush.bf16.msra.mxu0 %v1121
    %1133 = vmatpush.bf16.msra.mxu0 %v1120
    %1134 = vmatpush.bf16.msra.mxu0 %v1119
    %1135 = vmatpush.bf16.msra.mxu0 %v1118
    %1136 = vmatpush.bf16.msra.mxu0 %v1117
    %1137 = vmatpush.bf16.msra.mxu0 %v1116
    %1138 = vmatpush.bf16.msra.mxu0 %v1115
    %1139 = vmatmul.bf16.gmra.mxu0 %v1062
    %v1140 = vpop.f32.mrf.mxu0
    %v1141 = vadd.f32 %v1081, %v1140
    %v1142 = vpop.f32.mrf.mxu0
    %1143 = vdwg.mxu0
    %v1144 = vmax.f32 %v1141, 0.0
    %v1145 = vpack.c.bf16 %v1144, %v1144
    %v1146 = vld [vmem:[#allocation7] sm:$0xff]
    %v1147 = vld [vmem:[#allocation7 + $0x8] sm:$0xff]
    %v1148 = vld [vmem:[#allocation7 + $0x10] sm:$0xff]
    %v1149 = vld [vmem:[#allocation7 + $0x18] sm:$0xff]
    %v1150 = vld [vmem:[#allocation7 + $0x20] sm:$0xff]
    %v1151 = vld [vmem:[#allocation7 + $0x28] sm:$0xff]
    %v1152 = vld [vmem:[#allocation7 + $0x30] sm:$0xff]
    %v1153 = vld [vmem:[#allocation7 + $0x38] sm:$0xff]
    %v1154 = vld [vmem:[#allocation7 + $0x40] sm:$0xff]
    %v1155 = vld [vmem:[#allocation7 + $0x48] sm:$0xff]
    %v1156 = vld [vmem:[#allocation7 + $0x50] sm:$0xff]
    %v1157 = vld [vmem:[#allocation7 + $0x58] sm:$0xff]
    %v1158 = vld [vmem:[#allocation7 + $0x60] sm:$0xff]
    %v1159 = vld [vmem:[#allocation7 + $0x68] sm:$0xff]
    %v1160 = vld [vmem:[#allocation7 + $0x70] sm:$0xff]
    %v1161 = vld [vmem:[#allocation7 + $0x78] sm:$0xff]
    %v1162 = vld [vmem:[%s11] sm:$0x3]
    %v1164 = vperm.slane %v1162, 0
    %v1165 = vperm.slane %v1162, 1
    %v1184 = vunpack.c.l.b16 %v1146
    %v1185 = vunpack.c.h.b16 %v1146
    %v1186 = vunpack.c.l.b16 %v1147
    %v1187 = vunpack.c.h.b16 %v1147
    %v1188 = vunpack.c.l.b16 %v1148
    %v1189 = vunpack.c.h.b16 %v1148
    %v1190 = vunpack.c.l.b16 %v1149
    %v1191 = vunpack.c.h.b16 %v1149
    %v1192 = vunpack.c.l.b16 %v1150
    %v1193 = vunpack.c.h.b16 %v1150
    %v1194 = vunpack.c.l.b16 %v1151
    %v1195 = vunpack.c.h.b16 %v1151
    %v1196 = vunpack.c.l.b16 %v1152
    %v1197 = vunpack.c.h.b16 %v1152
    %v1198 = vunpack.c.l.b16 %v1153
    %v1199 = vunpack.c.h.b16 %v1153
    %v1200 = vunpack.c.l.b16 %v1154
    %v1201 = vunpack.c.h.b16 %v1154
    %v1202 = vunpack.c.l.b16 %v1155
    %v1203 = vunpack.c.h.b16 %v1155
    %v1204 = vunpack.c.l.b16 %v1156
    %v1205 = vunpack.c.h.b16 %v1156
    %v1206 = vunpack.c.l.b16 %v1157
    %v1207 = vunpack.c.h.b16 %v1157
    %v1208 = vunpack.c.l.b16 %v1158
    %v1209 = vunpack.c.h.b16 %v1158
    %v1210 = vunpack.c.l.b16 %v1159
    %v1211 = vunpack.c.h.b16 %v1159
    %v1212 = vunpack.c.l.b16 %v1160
    %v1213 = vunpack.c.h.b16 %v1160
    %v1214 = vunpack.c.l.b16 %v1161
    %v1215 = vunpack.c.h.b16 %v1161
    %v1216 = vpack.c.b16 %v1186, %v1184
    %v1217 = vpack.c.b16 %v1187, %v1185
    %v1218 = vpack.c.b16 %v1190, %v1188
    %v1219 = vpack.c.b16 %v1191, %v1189
    %v1220 = vpack.c.b16 %v1194, %v1192
    %v1221 = vpack.c.b16 %v1195, %v1193
    %v1222 = vpack.c.b16 %v1198, %v1196
    %v1223 = vpack.c.b16 %v1199, %v1197
    %v1224 = vpack.c.b16 %v1202, %v1200
    %v1225 = vpack.c.b16 %v1203, %v1201
    %v1226 = vpack.c.b16 %v1206, %v1204
    %v1227 = vpack.c.b16 %v1207, %v1205
    %v1228 = vpack.c.b16 %v1210, %v1208
    %v1229 = vpack.c.b16 %v1211, %v1209
    %v1230 = vpack.c.b16 %v1214, %v1212
    %v1231 = vpack.c.b16 %v1215, %v1213
    %1248 = vmatpush.bf16.msra.mxu0 %v1230
    %1249 = vmatpush.bf16.msra.mxu0 %v1228
    %1250 = vmatpush.bf16.msra.mxu0 %v1226
    %1251 = vmatpush.bf16.msra.mxu0 %v1224
    %1252 = vmatpush.bf16.msra.mxu0 %v1222
    %1253 = vmatpush.bf16.msra.mxu0 %v1220
    %1254 = vmatpush.bf16.msra.mxu0 %v1218
    %1255 = vmatpush.bf16.msra.mxu0 %v1216
    %1256 = vmatmul.bf16.gmra.mxu0 %v1145
    %v1257 = vpop.f32.mrf.mxu0
    %v1258 = vadd.f32 %v1164, %v1257
    %v1259 = vpop.f32.mrf.mxu0
    %1260 = vdwg.mxu0
    %1261 = vmatpush.bf16.msra.mxu0 %v1231
    %1262 = vmatpush.bf16.msra.mxu0 %v1229
    %1263 = vmatpush.bf16.msra.mxu0 %v1227
    %1264 = vmatpush.bf16.msra.mxu0 %v1225
    %1265 = vmatpush.bf16.msra.mxu0 %v1223
    %1266 = vmatpush.bf16.msra.mxu0 %v1221
    %1267 = vmatpush.bf16.msra.mxu0 %v1219
    %1268 = vmatpush.bf16.msra.mxu0 %v1217
    %1269 = vmatmul.bf16.gmra.mxu0 %v1145
    %v1270 = vpop.f32.mrf.mxu0
    %v1271 = vadd.f32 %v1165, %v1270
    %v1272 = vpop.f32.mrf.mxu0
    %1273 = vdwg.mxu0
    %v1274 = vmax.f32 %v1258, 0.0
    %v1275 = vmax.f32 %v1271, 0.0
    %v1276 = vpack.c.bf16 %v1274, %v1274
    %v1277 = vpack.c.bf16 %v1275, %v1275
    %v1278 = vld [vmem:[#allocation9] sm:$0xff]
    %v1279 = vld [vmem:[#allocation9 + $0x8] sm:$0xff]
    %v1280 = vld [vmem:[#allocation9 + $0x10] sm:$0xf]
    %v1281 = vld [vmem:[#allocation9 + $0x14] sm:$0xff]
    %v1282 = vld [vmem:[#allocation9 + $0x1c] sm:$0xff]
    %v1283 = vld [vmem:[#allocation9 + $0x24] sm:$0xf]
    %v1284 = vld [vmem:[#allocation9 + $0x28] sm:$0xff]
    %v1285 = vld [vmem:[#allocation9 + $0x30] sm:$0xff]
    %v1286 = vld [vmem:[#allocation9 + $0x38] sm:$0xf]
    %v1287 = vld [vmem:[#allocation9 + $0x3c] sm:$0xff]
    %v1288 = vld [vmem:[#allocation9 + $0x44] sm:$0xff]
    %v1289 = vld [vmem:[#allocation9 + $0x4c] sm:$0xf]
    %v1290 = vld [vmem:[#allocation9 + $0x50] sm:$0xff]
    %v1291 = vld [vmem:[#allocation9 + $0x58] sm:$0xff]
    %v1292 = vld [vmem:[#allocation9 + $0x60] sm:$0xf]
    %v1293 = vld [vmem:[#allocation9 + $0x64] sm:$0xff]
    %v1294 = vld [vmem:[#allocation9 + $0x6c] sm:$0xff]
    %v1295 = vld [vmem:[#allocation9 + $0x74] sm:$0xf]
    %v1296 = vld [vmem:[#allocation9 + $0x78] sm:$0xff]
    %v1297 = vld [vmem:[#allocation9 + $0x80] sm:$0xff]
    %v1298 = vld [vmem:[#allocation9 + $0x88] sm:$0xf]
    %v1299 = vld [vmem:[#allocation9 + $0x8c] sm:$0xff]
    %v1300 = vld [vmem:[#allocation9 + $0x94] sm:$0xff]
    %v1301 = vld [vmem:[#allocation9 + $0x9c] sm:$0xf]
    %v1302 = vld [vmem:[#allocation9 + $0xa0] sm:$0xff]
    %v1303 = vld [vmem:[#allocation9 + $0xa8] sm:$0xff]
    %v1304 = vld [vmem:[#allocation9 + $0xb0] sm:$0xf]
    %v1305 = vld [vmem:[#allocation9 + $0xb4] sm:$0xff]
    %v1306 = vld [vmem:[#allocation9 + $0xbc] sm:$0xff]
    %v1307 = vld [vmem:[#allocation9 + $0xc4] sm:$0xf]
    %v1308 = vld [vmem:[#allocation9 + $0xc8] sm:$0xff]
    %v1309 = vld [vmem:[#allocation9 + $0xd0] sm:$0xff]
    %v1310 = vld [vmem:[#allocation9 + $0xd8] sm:$0xf]
    %v1311 = vld [vmem:[#allocation9 + $0xdc] sm:$0xff]
    %v1312 = vld [vmem:[#allocation9 + $0xe4] sm:$0xff]
    %v1313 = vld [vmem:[#allocation9 + $0xec] sm:$0xf]
    %v1314 = vld [vmem:[#allocation9 + $0xf0] sm:$0xff]
    %v1315 = vld [vmem:[#allocation9 + $0xf8] sm:$0xff]
    %v1316 = vld [vmem:[#allocation9 + $0x100] sm:$0xf]
    %v1317 = vld [vmem:[#allocation9 + $0x104] sm:$0xff]
    %v1318 = vld [vmem:[#allocation9 + $0x10c] sm:$0xff]
    %v1319 = vld [vmem:[#allocation9 + $0x114] sm:$0xf]
    %v1320 = vld [vmem:[#allocation9 + $0x118] sm:$0xff]
    %v1321 = vld [vmem:[#allocation9 + $0x120] sm:$0xff]
    %v1322 = vld [vmem:[#allocation9 + $0x128] sm:$0xf]
    %v1323 = vld [vmem:[#allocation9 + $0x12c] sm:$0xff]
    %v1324 = vld [vmem:[#allocation9 + $0x134] sm:$0xff]
    %v1325 = vld [vmem:[#allocation9 + $0x13c] sm:$0xf]
    %v1326 = vld [vmem:[#allocation9 + $0x140] sm:$0xff]
    %v1327 = vld [vmem:[#allocation9 + $0x148] sm:$0xff]
    %v1328 = vld [vmem:[#allocation9 + $0x150] sm:$0xf]
    %v1329 = vld [vmem:[#allocation9 + $0x154] sm:$0xff]
    %v1330 = vld [vmem:[#allocation9 + $0x15c] sm:$0xff]
    %v1331 = vld [vmem:[#allocation9 + $0x164] sm:$0xf]
    %v1332 = vld [vmem:[#allocation9 + $0x168] sm:$0xff]
    %v1333 = vld [vmem:[#allocation9 + $0x170] sm:$0xff]
    %v1334 = vld [vmem:[#allocation9 + $0x178] sm:$0xf]
    %v1335 = vld [vmem:[#allocation9 + $0x17c] sm:$0xff]
    %v1336 = vld [vmem:[#allocation9 + $0x184] sm:$0xff]
    %v1337 = vld [vmem:[#allocation9 + $0x18c] sm:$0xf]
    %v1338 = vld [vmem:[#allocation9 + $0x190] sm:$0xff]
    %v1339 = vld [vmem:[#allocation9 + $0x198] sm:$0xff]
    %v1340 = vld [vmem:[#allocation9 + $0x1a0] sm:$0xf]
    %v1341 = vld [vmem:[#allocation9 + $0x1a4] sm:$0xff]
    %v1342 = vld [vmem:[#allocation9 + $0x1ac] sm:$0xff]
    %v1343 = vld [vmem:[#allocation9 + $0x1b4] sm:$0xf]
    %v1344 = vld [vmem:[#allocation9 + $0x1b8] sm:$0xff]
    %v1345 = vld [vmem:[#allocation9 + $0x1c0] sm:$0xff]
    %v1346 = vld [vmem:[#allocation9 + $0x1c8] sm:$0xf]
    %v1347 = vld [vmem:[#allocation9 + $0x1cc] sm:$0xff]
    %v1348 = vld [vmem:[#allocation9 + $0x1d4] sm:$0xff]
    %v1349 = vld [vmem:[#allocation9 + $0x1dc] sm:$0xf]
    %v1350 = vld [vmem:[#allocation9 + $0x1e0] sm:$0xff]
    %v1351 = vld [vmem:[#allocation9 + $0x1e8] sm:$0xff]
    %v1352 = vld [vmem:[#allocation9 + $0x1f0] sm:$0xf]
    %v1353 = vld [vmem:[#allocation9 + $0x1f4] sm:$0xff]
    %v1354 = vld [vmem:[#allocation9 + $0x1fc] sm:$0xff]
    %v1355 = vld [vmem:[#allocation9 + $0x204] sm:$0xf]
    %v1356 = vld [vmem:[#allocation9 + $0x208] sm:$0xff]
    %v1357 = vld [vmem:[#allocation9 + $0x210] sm:$0xff]
    %v1358 = vld [vmem:[#allocation9 + $0x218] sm:$0xf]
    %v1359 = vld [vmem:[#allocation9 + $0x21c] sm:$0xff]
    %v1360 = vld [vmem:[#allocation9 + $0x224] sm:$0xff]
    %v1361 = vld [vmem:[#allocation9 + $0x22c] sm:$0xf]
    %v1362 = vld [vmem:[#allocation9 + $0x230] sm:$0xff]
    %v1363 = vld [vmem:[#allocation9 + $0x238] sm:$0xff]
    %v1364 = vld [vmem:[#allocation9 + $0x240] sm:$0xf]
    %v1365 = vld [vmem:[#allocation9 + $0x244] sm:$0xff]
    %v1366 = vld [vmem:[#allocation9 + $0x24c] sm:$0xff]
    %v1367 = vld [vmem:[#allocation9 + $0x254] sm:$0xf]
    %v1368 = vld [vmem:[#allocation9 + $0x258] sm:$0xff]
    %v1369 = vld [vmem:[#allocation9 + $0x260] sm:$0xff]
    %v1370 = vld [vmem:[#allocation9 + $0x268] sm:$0xf]
    %v1371 = vld [vmem:[#allocation9 + $0x26c] sm:$0xff]
    %v1372 = vld [vmem:[#allocation9 + $0x274] sm:$0xff]
    %v1373 = vld [vmem:[#allocation9 + $0x27c] sm:$0xf]
    %v1374 = vld [vmem:[%s13] sm:$0x1f]
    %v1376 = vperm.slane %v1374, 0
    %v1377 = vperm.slane %v1374, 1
    %v1378 = vperm.slane %v1374, 2
    %v1379 = vperm.slane %v1374, 3
    %v1380 = vperm.slane %v1374, 4
    %v1482 = vunpack.c.l.b16 %v1278
    %v1483 = vunpack.c.h.b16 %v1278
    %v1484 = vunpack.c.l.b16 %v1279
    %v1485 = vunpack.c.h.b16 %v1279
    %v1486 = vunpack.c.l.b16 %v1280
    %v1487 = vunpack.c.l.b16 %v1281
    %v1488 = vunpack.c.h.b16 %v1281
    %v1489 = vunpack.c.l.b16 %v1282
    %v1490 = vunpack.c.h.b16 %v1282
    %v1491 = vunpack.c.l.b16 %v1283
    %v1492 = vunpack.c.l.b16 %v1284
    %v1493 = vunpack.c.h.b16 %v1284
    %v1494 = vunpack.c.l.b16 %v1285
    %v1495 = vunpack.c.h.b16 %v1285
    %v1496 = vunpack.c.l.b16 %v1286
    %v1497 = vunpack.c.l.b16 %v1287
    %v1498 = vunpack.c.h.b16 %v1287
    %v1499 = vunpack.c.l.b16 %v1288
    %v1500 = vunpack.c.h.b16 %v1288
    %v1501 = vunpack.c.l.b16 %v1289
    %v1502 = vunpack.c.l.b16 %v1290
    %v1503 = vunpack.c.h.b16 %v1290
    %v1504 = vunpack.c.l.b16 %v1291
    %v1505 = vunpack.c.h.b16 %v1291
    %v1506 = vunpack.c.l.b16 %v1292
    %v1507 = vunpack.c.l.b16 %v1293
    %v1508 = vunpack.c.h.b16 %v1293
    %v1509 = vunpack.c.l.b16 %v1294
    %v1510 = vunpack.c.h.b16 %v1294
    %v1511 = vunpack.c.l.b16 %v1295
    %v1512 = vunpack.c.l.b16 %v1296
    %v1513 = vunpack.c.h.b16 %v1296
    %v1514 = vunpack.c.l.b16 %v1297
    %v1515 = vunpack.c.h.b16 %v1297
    %v1516 = vunpack.c.l.b16 %v1298
    %v1517 = vunpack.c.l.b16 %v1299
    %v1518 = vunpack.c.h.b16 %v1299
    %v1519 = vunpack.c.l.b16 %v1300
    %v1520 = vunpack.c.h.b16 %v1300
    %v1521 = vunpack.c.l.b16 %v1301
    %v1522 = vunpack.c.l.b16 %v1302
    %v1523 = vunpack.c.h.b16 %v1302
    %v1524 = vunpack.c.l.b16 %v1303
    %v1525 = vunpack.c.h.b16 %v1303
    %v1526 = vunpack.c.l.b16 %v1304
    %v1527 = vunpack.c.l.b16 %v1305
    %v1528 = vunpack.c.h.b16 %v1305
    %v1529 = vunpack.c.l.b16 %v1306
    %v1530 = vunpack.c.h.b16 %v1306
    %v1531 = vunpack.c.l.b16 %v1307
    %v1532 = vunpack.c.l.b16 %v1308
    %v1533 = vunpack.c.h.b16 %v1308
    %v1534 = vunpack.c.l.b16 %v1309
    %v1535 = vunpack.c.h.b16 %v1309
    %v1536 = vunpack.c.l.b16 %v1310
    %v1537 = vunpack.c.l.b16 %v1311
    %v1538 = vunpack.c.h.b16 %v1311
    %v1539 = vunpack.c.l.b16 %v1312
    %v1540 = vunpack.c.h.b16 %v1312
    %v1541 = vunpack.c.l.b16 %v1313
    %v1542 = vunpack.c.l.b16 %v1314
    %v1543 = vunpack.c.h.b16 %v1314
    %v1544 = vunpack.c.l.b16 %v1315
    %v1545 = vunpack.c.h.b16 %v1315
    %v1546 = vunpack.c.l.b16 %v1316
    %v1547 = vunpack.c.l.b16 %v1317
    %v1548 = vunpack.c.h.b16 %v1317
    %v1549 = vunpack.c.l.b16 %v1318
    %v1550 = vunpack.c.h.b16 %v1318
    %v1551 = vunpack.c.l.b16 %v1319
    %v1552 = vunpack.c.l.b16 %v1320
    %v1553 = vunpack.c.h.b16 %v1320
    %v1554 = vunpack.c.l.b16 %v1321
    %v1555 = vunpack.c.h.b16 %v1321
    %v1556 = vunpack.c.l.b16 %v1322
    %v1557 = vunpack.c.l.b16 %v1323
    %v1558 = vunpack.c.h.b16 %v1323
    %v1559 = vunpack.c.l.b16 %v1324
    %v1560 = vunpack.c.h.b16 %v1324
    %v1561 = vunpack.c.l.b16 %v1325
    %v1562 = vunpack.c.l.b16 %v1326
    %v1563 = vunpack.c.h.b16 %v1326
    %v1564 = vunpack.c.l.b16 %v1327
    %v1565 = vunpack.c.h.b16 %v1327
    %v1566 = vunpack.c.l.b16 %v1328
    %v1567 = vunpack.c.l.b16 %v1329
    %v1568 = vunpack.c.h.b16 %v1329
    %v1569 = vunpack.c.l.b16 %v1330
    %v1570 = vunpack.c.h.b16 %v1330
    %v1571 = vunpack.c.l.b16 %v1331
    %v1572 = vunpack.c.l.b16 %v1332
    %v1573 = vunpack.c.h.b16 %v1332
    %v1574 = vunpack.c.l.b16 %v1333
    %v1575 = vunpack.c.h.b16 %v1333
    %v1576 = vunpack.c.l.b16 %v1334
    %v1577 = vunpack.c.l.b16 %v1335
    %v1578 = vunpack.c.h.b16 %v1335
    %v1579 = vunpack.c.l.b16 %v1336
    %v1580 = vunpack.c.h.b16 %v1336
    %v1581 = vunpack.c.l.b16 %v1337
    %v1582 = vunpack.c.l.b16 %v1338
    %v1583 = vunpack.c.h.b16 %v1338
    %v1584 = vunpack.c.l.b16 %v1339
    %v1585 = vunpack.c.h.b16 %v1339
    %v1586 = vunpack.c.l.b16 %v1340
    %v1587 = vunpack.c.l.b16 %v1341
    %v1588 = vunpack.c.h.b16 %v1341
    %v1589 = vunpack.c.l.b16 %v1342
    %v1590 = vunpack.c.h.b16 %v1342
    %v1591 = vunpack.c.l.b16 %v1343
    %v1592 = vunpack.c.l.b16 %v1344
    %v1593 = vunpack.c.h.b16 %v1344
    %v1594 = vunpack.c.l.b16 %v1345
    %v1595 = vunpack.c.h.b16 %v1345
    %v1596 = vunpack.c.l.b16 %v1346
    %v1597 = vunpack.c.l.b16 %v1347
    %v1598 = vunpack.c.h.b16 %v1347
    %v1599 = vunpack.c.l.b16 %v1348
    %v1600 = vunpack.c.h.b16 %v1348
    %v1601 = vunpack.c.l.b16 %v1349
    %v1602 = vunpack.c.l.b16 %v1350
    %v1603 = vunpack.c.h.b16 %v1350
    %v1604 = vunpack.c.l.b16 %v1351
    %v1605 = vunpack.c.h.b16 %v1351
    %v1606 = vunpack.c.l.b16 %v1352
    %v1607 = vunpack.c.l.b16 %v1353
    %v1608 = vunpack.c.h.b16 %v1353
    %v1609 = vunpack.c.l.b16 %v1354
    %v1610 = vunpack.c.h.b16 %v1354
    %v1611 = vunpack.c.l.b16 %v1355
    %v1612 = vunpack.c.l.b16 %v1356
    %v1613 = vunpack.c.h.b16 %v1356
    %v1614 = vunpack.c.l.b16 %v1357
    %v1615 = vunpack.c.h.b16 %v1357
    %v1616 = vunpack.c.l.b16 %v1358
    %v1617 = vunpack.c.l.b16 %v1359
    %v1618 = vunpack.c.h.b16 %v1359
    %v1619 = vunpack.c.l.b16 %v1360
    %v1620 = vunpack.c.h.b16 %v1360
    %v1621 = vunpack.c.l.b16 %v1361
    %v1622 = vunpack.c.l.b16 %v1362
    %v1623 = vunpack.c.h.b16 %v1362
    %v1624 = vunpack.c.l.b16 %v1363
    %v1625 = vunpack.c.h.b16 %v1363
    %v1626 = vunpack.c.l.b16 %v1364
    %v1627 = vunpack.c.l.b16 %v1365
    %v1628 = vunpack.c.h.b16 %v1365
    %v1629 = vunpack.c.l.b16 %v1366
    %v1630 = vunpack.c.h.b16 %v1366
    %v1631 = vunpack.c.l.b16 %v1367
    %v1632 = vunpack.c.l.b16 %v1368
    %v1633 = vunpack.c.h.b16 %v1368
    %v1634 = vunpack.c.l.b16 %v1369
    %v1635 = vunpack.c.h.b16 %v1369
    %v1636 = vunpack.c.l.b16 %v1370
    %v1637 = vunpack.c.l.b16 %v1371
    %v1638 = vunpack.c.h.b16 %v1371
    %v1639 = vunpack.c.l.b16 %v1372
    %v1640 = vunpack.c.h.b16 %v1372
    %v1641 = vunpack.c.l.b16 %v1373
    %v1642 = vpack.c.b16 %v1487, %v1482
    %v1643 = vpack.c.b16 %v1488, %v1483
    %v1644 = vpack.c.b16 %v1489, %v1484
    %v1645 = vpack.c.b16 %v1490, %v1485
    %v1646 = vpack.c.b16 %v1491, %v1486
    %v1647 = vpack.c.b16 %v1497, %v1492
    %v1648 = vpack.c.b16 %v1498, %v1493
    %v1649 = vpack.c.b16 %v1499, %v1494
    %v1650 = vpack.c.b16 %v1500, %v1495
    %v1651 = vpack.c.b16 %v1501, %v1496
    %v1652 = vpack.c.b16 %v1507, %v1502
    %v1653 = vpack.c.b16 %v1508, %v1503
    %v1654 = vpack.c.b16 %v1509, %v1504
    %v1655 = vpack.c.b16 %v1510, %v1505
    %v1656 = vpack.c.b16 %v1511, %v1506
    %v1657 = vpack.c.b16 %v1517, %v1512
    %v1658 = vpack.c.b16 %v1518, %v1513
    %v1659 = vpack.c.b16 %v1519, %v1514
    %v1660 = vpack.c.b16 %v1520, %v1515
    %v1661 = vpack.c.b16 %v1521, %v1516
    %v1662 = vpack.c.b16 %v1527, %v1522
    %v1663 = vpack.c.b16 %v1528, %v1523
    %v1664 = vpack.c.b16 %v1529, %v1524
    %v1665 = vpack.c.b16 %v1530, %v1525
    %v1666 = vpack.c.b16 %v1531, %v1526
    %v1667 = vpack.c.b16 %v1537, %v1532
    %v1668 = vpack.c.b16 %v1538, %v1533
    %v1669 = vpack.c.b16 %v1539, %v1534
    %v1670 = vpack.c.b16 %v1540, %v1535
    %v1671 = vpack.c.b16 %v1541, %v1536
    %v1672 = vpack.c.b16 %v1547, %v1542
    %v1673 = vpack.c.b16 %v1548, %v1543
    %v1674 = vpack.c.b16 %v1549, %v1544
    %v1675 = vpack.c.b16 %v1550, %v1545
    %v1676 = vpack.c.b16 %v1551, %v1546
    %v1677 = vpack.c.b16 %v1557, %v1552
    %v1678 = vpack.c.b16 %v1558, %v1553
    %v1679 = vpack.c.b16 %v1559, %v1554
    %v1680 = vpack.c.b16 %v1560, %v1555
    %v1681 = vpack.c.b16 %v1561, %v1556
    %v1682 = vpack.c.b16 %v1567, %v1562
    %v1683 = vpack.c.b16 %v1568, %v1563
    %v1684 = vpack.c.b16 %v1569, %v1564
    %v1685 = vpack.c.b16 %v1570, %v1565
    %v1686 = vpack.c.b16 %v1571, %v1566
    %v1687 = vpack.c.b16 %v1577, %v1572
    %v1688 = vpack.c.b16 %v1578, %v1573
    %v1689 = vpack.c.b16 %v1579, %v1574
    %v1690 = vpack.c.b16 %v1580, %v1575
    %v1691 = vpack.c.b16 %v1581, %v1576
    %v1692 = vpack.c.b16 %v1587, %v1582
    %v1693 = vpack.c.b16 %v1588, %v1583
    %v1694 = vpack.c.b16 %v1589, %v1584
    %v1695 = vpack.c.b16 %v1590, %v1585
    %v1696 = vpack.c.b16 %v1591, %v1586
    %v1697 = vpack.c.b16 %v1597, %v1592
    %v1698 = vpack.c.b16 %v1598, %v1593
    %v1699 = vpack.c.b16 %v1599, %v1594
    %v1700 = vpack.c.b16 %v1600, %v1595
    %v1701 = vpack.c.b16 %v1601, %v1596
    %v1702 = vpack.c.b16 %v1607, %v1602
    %v1703 = vpack.c.b16 %v1608, %v1603
    %v1704 = vpack.c.b16 %v1609, %v1604
    %v1705 = vpack.c.b16 %v1610, %v1605
    %v1706 = vpack.c.b16 %v1611, %v1606
    %v1707 = vpack.c.b16 %v1617, %v1612
    %v1708 = vpack.c.b16 %v1618, %v1613
    %v1709 = vpack.c.b16 %v1619, %v1614
    %v1710 = vpack.c.b16 %v1620, %v1615
    %v1711 = vpack.c.b16 %v1621, %v1616
    %v1712 = vpack.c.b16 %v1627, %v1622
    %v1713 = vpack.c.b16 %v1628, %v1623
    %v1714 = vpack.c.b16 %v1629, %v1624
    %v1715 = vpack.c.b16 %v1630, %v1625
    %v1716 = vpack.c.b16 %v1631, %v1626
    %v1717 = vpack.c.b16 %v1637, %v1632
    %v1718 = vpack.c.b16 %v1638, %v1633
    %v1719 = vpack.c.b16 %v1639, %v1634
    %v1720 = vpack.c.b16 %v1640, %v1635
    %v1721 = vpack.c.b16 %v1641, %v1636
    %1802 = vmatpush.bf16.msra.mxu0 %v1677
    %1803 = vmatpush.bf16.msra.mxu0 %v1672
    %1804 = vmatpush.bf16.msra.mxu0 %v1667
    %1805 = vmatpush.bf16.msra.mxu0 %v1662
    %1806 = vmatpush.bf16.msra.mxu0 %v1657
    %1807 = vmatpush.bf16.msra.mxu0 %v1652
    %1808 = vmatpush.bf16.msra.mxu0 %v1647
    %1809 = vmatpush.bf16.msra.mxu0 %v1642
    %1810 = vmatmul.bf16.gmra.mxu0 %v1276
    %v1811 = vpop.f32.mrf.mxu0
    %v1812 = vadd.f32 %v1376, %v1811
    %v1813 = vpop.f32.mrf.mxu0
    %1814 = vdwg.mxu0
    %1815 = vmatpush.bf16.msra.mxu0 %v1717
    %1816 = vmatpush.bf16.msra.mxu0 %v1712
    %1817 = vmatpush.bf16.msra.mxu0 %v1707
    %1818 = vmatpush.bf16.msra.mxu0 %v1702
    %1819 = vmatpush.bf16.msra.mxu0 %v1697
    %1820 = vmatpush.bf16.msra.mxu0 %v1692
    %1821 = vmatpush.bf16.msra.mxu0 %v1687
    %1822 = vmatpush.bf16.msra.mxu0 %v1682
    %1823 = vmatmul.bf16.gmra.mxu0 %v1277
    %v1824 = vpop.f32.mrf.mxu0
    %v1825 = vadd.f32 %v1812, %v1824
    %v1826 = vpop.f32.mrf.mxu0
    %1827 = vdwg.mxu0
    %1828 = vmatpush.bf16.msra.mxu0 %v1678
    %1829 = vmatpush.bf16.msra.mxu0 %v1673
    %1830 = vmatpush.bf16.msra.mxu0 %v1668
    %1831 = vmatpush.bf16.msra.mxu0 %v1663
    %1832 = vmatpush.bf16.msra.mxu0 %v1658
    %1833 = vmatpush.bf16.msra.mxu0 %v1653
    %1834 = vmatpush.bf16.msra.mxu0 %v1648
    %1835 = vmatpush.bf16.msra.mxu0 %v1643
    %1836 = vmatmul.bf16.gmra.mxu0 %v1276
    %v1837 = vpop.f32.mrf.mxu0
    %v1838 = vadd.f32 %v1377, %v1837
    %v1839 = vpop.f32.mrf.mxu0
    %1840 = vdwg.mxu0
    %1841 = vmatpush.bf16.msra.mxu0 %v1718
    %1842 = vmatpush.bf16.msra.mxu0 %v1713
    %1843 = vmatpush.bf16.msra.mxu0 %v1708
    %1844 = vmatpush.bf16.msra.mxu0 %v1703
    %1845 = vmatpush.bf16.msra.mxu0 %v1698
    %1846 = vmatpush.bf16.msra.mxu0 %v1693
    %1847 = vmatpush.bf16.msra.mxu0 %v1688
    %1848 = vmatpush.bf16.msra.mxu0 %v1683
    %1849 = vmatmul.bf16.gmra.mxu0 %v1277
    %v1850 = vpop.f32.mrf.mxu0
    %v1851 = vadd.f32 %v1838, %v1850
    %v1852 = vpop.f32.mrf.mxu0
    %1853 = vdwg.mxu0
    %1854 = vmatpush.bf16.msra.mxu0 %v1679
    %1855 = vmatpush.bf16.msra.mxu0 %v1674
    %1856 = vmatpush.bf16.msra.mxu0 %v1669
    %1857 = vmatpush.bf16.msra.mxu0 %v1664
    %1858 = vmatpush.bf16.msra.mxu0 %v1659
    %1859 = vmatpush.bf16.msra.mxu0 %v1654
    %1860 = vmatpush.bf16.msra.mxu0 %v1649
    %1861 = vmatpush.bf16.msra.mxu0 %v1644
    %1862 = vmatmul.bf16.gmra.mxu0 %v1276
    %v1863 = vpop.f32.mrf.mxu0
    %v1864 = vadd.f32 %v1378, %v1863
    %v1865 = vpop.f32.mrf.mxu0
    %1866 = vdwg.mxu0
    %1867 = vmatpush.bf16.msra.mxu0 %v1719
    %1868 = vmatpush.bf16.msra.mxu0 %v1714
    %1869 = vmatpush.bf16.msra.mxu0 %v1709
    %1870 = vmatpush.bf16.msra.mxu0 %v1704
    %1871 = vmatpush.bf16.msra.mxu0 %v1699
    %1872 = vmatpush.bf16.msra.mxu0 %v1694
    %1873 = vmatpush.bf16.msra.mxu0 %v1689
    %1874 = vmatpush.bf16.msra.mxu0 %v1684
    %1875 = vmatmul.bf16.gmra.mxu0 %v1277
    %v1876 = vpop.f32.mrf.mxu0
    %v1877 = vadd.f32 %v1864, %v1876
    %v1878 = vpop.f32.mrf.mxu0
    %1879 = vdwg.mxu0
    %1880 = vmatpush.bf16.msra.mxu0 %v1680
    %1881 = vmatpush.bf16.msra.mxu0 %v1675
    %1882 = vmatpush.bf16.msra.mxu0 %v1670
    %1883 = vmatpush.bf16.msra.mxu0 %v1665
    %1884 = vmatpush.bf16.msra.mxu0 %v1660
    %1885 = vmatpush.bf16.msra.mxu0 %v1655
    %1886 = vmatpush.bf16.msra.mxu0 %v1650
    %1887 = vmatpush.bf16.msra.mxu0 %v1645
    %1888 = vmatmul.bf16.gmra.mxu0 %v1276
    %v1889 = vpop.f32.mrf.mxu0
    %v1890 = vadd.f32 %v1379, %v1889
    %v1891 = vpop.f32.mrf.mxu0
    %1892 = vdwg.mxu0
    %1893 = vmatpush.bf16.msra.mxu0 %v1720
    %1894 = vmatpush.bf16.msra.mxu0 %v1715
    %1895 = vmatpush.bf16.msra.mxu0 %v1710
    %1896 = vmatpush.bf16.msra.mxu0 %v1705
    %1897 = vmatpush.bf16.msra.mxu0 %v1700
    %1898 = vmatpush.bf16.msra.mxu0 %v1695
    %1899 = vmatpush.bf16.msra.mxu0 %v1690
    %1900 = vmatpush.bf16.msra.mxu0 %v1685
    %1901 = vmatmul.bf16.gmra.mxu0 %v1277
    %v1902 = vpop.f32.mrf.mxu0
    %v1903 = vadd.f32 %v1890, %v1902
    %v1904 = vpop.f32.mrf.mxu0
    %1905 = vdwg.mxu0
    %1906 = vmatpush.bf16.msra.mxu0 %v1681
    %1907 = vmatpush.bf16.msra.mxu0 %v1676
    %1908 = vmatpush.bf16.msra.mxu0 %v1671
    %1909 = vmatpush.bf16.msra.mxu0 %v1666
    %1910 = vmatpush.bf16.msra.mxu0 %v1661
    %1911 = vmatpush.bf16.msra.mxu0 %v1656
    %1912 = vmatpush.bf16.msra.mxu0 %v1651
    %1913 = vmatpush.bf16.msra.mxu0 %v1646
    %1914 = vmatmul.bf16.gmra.mxu0 %v1276
    %v1915 = vpop.f32.mrf.mxu0
    %v1916 = vadd.f32 %v1380, %v1915
    %v1917 = vpop.f32.mrf.mxu0
    %1918 = vdwg.mxu0
    %1919 = vmatpush.bf16.msra.mxu0 %v1721
    %1920 = vmatpush.bf16.msra.mxu0 %v1716
    %1921 = vmatpush.bf16.msra.mxu0 %v1711
    %1922 = vmatpush.bf16.msra.mxu0 %v1706
    %1923 = vmatpush.bf16.msra.mxu0 %v1701
    %1924 = vmatpush.bf16.msra.mxu0 %v1696
    %1925 = vmatpush.bf16.msra.mxu0 %v1691
    %1926 = vmatpush.bf16.msra.mxu0 %v1686
    %1927 = vmatmul.bf16.gmra.mxu0 %v1277
    %v1928 = vpop.f32.mrf.mxu0
    %v1929 = vadd.f32 %v1916, %v1928
    %v1930 = vpop.f32.mrf.mxu0
    %1931 = vdwg.mxu0
    %v1932 = vsub.f32 0.0, %v1825
    %v1933 = vsub.f32 0.0, %v1851
    %v1934 = vsub.f32 0.0, %v1877
    %v1935 = vsub.f32 0.0, %v1903
    %v1936 = vsub.f32 0.0, %v1929
    %v1937 = vmul.f32 %v1932, 1.442695
    %v1938 = vpow.pop %v1937
    %v1939 = vmul.f32 %v1933, 1.442695
    %v1940 = vpow.pop %v1939
    %v1941 = vmul.f32 %v1934, 1.442695
    %v1942 = vpow.pop %v1941
    %v1943 = vmul.f32 %v1935, 1.442695
    %v1944 = vpow.pop %v1943
    %v1945 = vmul.f32 %v1936, 1.442695
    %v1946 = vpow.pop %v1945
    %v1947 = vadd.f32 %v1938, 1.0
    %v1948 = vadd.f32 %v1940, 1.0
    %v1949 = vadd.f32 %v1942, 1.0
    %v1950 = vadd.f32 %v1944, 1.0
    %v1951 = vadd.f32 %v1946, 1.0
    %v1952 = vrcp.pop %v1947
    %v1953 = vrcp.pop %v1948
    %v1954 = vrcp.pop %v1949
    %v1955 = vrcp.pop %v1950
    %v1956 = vrcp.pop %v1951
    %v1957 = vmax.f32 %v1952, 0.0
    %v1958 = vmax.f32 %v1953, 0.0
    %v1959 = vmax.f32 %v1954, 0.0
    %v1960 = vmax.f32 %v1955, 0.0
    %v1961 = vmax.f32 %v1956, 0.0
    %v1962 = vmin.f32 %v1957, 1.0
    %v1963 = vmin.f32 %v1958, 1.0
    %v1964 = vmin.f32 %v1959, 1.0
    %v1965 = vmin.f32 %v1960, 1.0
    %v1966 = vmin.f32 %v1961, 1.0
    %v1967 = vpack.c.bf16 %v1963, %v1962
    %v1968 = vpack.c.bf16 %v1965, %v1964
    %v1969 = vpack.c.bf16 %v1966, %v1966
    %1970 = vst [vmem:[%s14] sm:$0xff] %v1967
    %1971 = vst [vmem:[%s14 + $0x8] sm:$0xff] %v1968
    %1972 = vst [vmem:[%s14 + $0x10] sm:$0xf] %v1969
    %1973 = vst [vmem:[%s15] sm:$0xff] %v1040
    %1974 = vst [vmem:[%s15 + $0x8] sm:$0xff] %v1053
    // Predicated region
    $region78: #{vae_forward.1} parent=1 // pred_check
      _
    $region79: #{vae_forward.1} parent=1 // pred_check_branch
      %1976 = sbr.rel (0) target = $region81
    $region80: #{vae_forward.1} parent=1 // pred_region
      _
    $region81: #{vae_forward.1} parent=1 // pred_fallthru
      _
    // Predicated region
    $region82: #{vae_forward.1} parent=1 // pred_check
      _
    $region83: #{vae_forward.1} parent=1 // pred_check_branch
      %1978 = sbr.rel (0) target = $region85
    $region84: #{vae_forward.1} parent=1 // pred_region
      _
    $region85: #{vae_forward.1} parent=1 // pred_fallthru
      _
    // Predicated region
    $region86: #{vae_forward.1} parent=1 // pred_check
      _
    $region87: #{vae_forward.1} parent=1 // pred_check_branch
      %1980 = sbr.rel (0) target = $region89
    $region88: #{vae_forward.1} parent=1 // pred_region
      _
    $region89: #{vae_forward.1} parent=1 // pred_fallthru
      _
    // Predicated region
    $region90: #{vae_forward.1} parent=1 // pred_check
      _
    $region91: #{vae_forward.1} parent=1 // pred_check_branch
      %1982 = sbr.rel (0) target = $region93
    $region92: #{vae_forward.1} parent=1 // pred_region
      _
    $region93: #{vae_forward.1} parent=1 // pred_fallthru
      _
    %1983 = vsyncpa [#allocation3], 1
    %1984 = vsyncpa [#allocation5], 1
    %1985 = vsyncpa [#allocation8], 1

</llo_original>
